<compile_context>
chip_gen: v7x
topology: tpu7x:2x2x1
jax: 0.10.0
libtpu: 0.0.40
codegen_flags: <defaults>
</compile_context>

<pallas_src>
import math

import jax
import jax.numpy as jnp
from jax.experimental import pallas as pl
from jax.experimental.pallas import tpu as pltpu

LANE = 128


def _round_up(x, m):
    return (x + m - 1) // m * m


def _cdiv(a, b):
    return -(-a // b)


def _vmem_budget_bytes():
    """Generation-aware VMEM budget: ~85% of per-core VMEM.
    v5e/v6e (128 MiB) -> ~109 MiB, v7x (64 MiB) -> ~54 MiB."""
    try:
        cap = int(pltpu.get_tpu_info().vmem_capacity_bytes)
    except Exception:
        cap = 64 * 1024 * 1024  # conservative default: v7x per-TensorCore VMEM
    return int(cap * 0.85)


def _ffn_kernel_resident(x_ref, w1_ref, b1_ref, w2_ref, b2_ref, o_ref):
    """Full weights resident in VMEM; one (tm, d_in) row tile per grid step."""
    x = x_ref[...]
    h = jnp.dot(x, w1_ref[...], preferred_element_type=jnp.float32) + b1_ref[...]
    h = jnp.maximum(h, 0.0)
    y = jnp.dot(h.astype(w2_ref.dtype), w2_ref[...],
                preferred_element_type=jnp.float32) + b2_ref[...]
    o_ref[...] = y.astype(o_ref.dtype)


def _ffn_kernel_ktiled(x_ref, w1_ref, b1_ref, w2_ref, b2_ref, o_ref, acc_ref):
    """Hidden dim streamed in chunks; f32 accumulator over the k grid axis."""
    k = pl.program_id(1)

    @pl.when(k == 0)
    def _():
        acc_ref[...] = jnp.zeros_like(acc_ref)

    h = jnp.dot(x_ref[...], w1_ref[...], preferred_element_type=jnp.float32)
    h = jnp.maximum(h + b1_ref[...], 0.0)
    acc_ref[...] += jnp.dot(h.astype(w2_ref.dtype), w2_ref[...],
                            preferred_element_type=jnp.float32)

    @pl.when(k == pl.num_programs(1) - 1)
    def _():
        o_ref[...] = (acc_ref[...] + b2_ref[...]).astype(o_ref.dtype)


def position_wise_ffn(x, w1, b1, w2, b2, *, block_m=512, block_hidden=512,
                      vmem_limit_bytes=None, force_hidden_tiling=False):
    """out = relu(x @ w1 + b1) @ w2 + b2 applied position-wise.

    x:  (..., d_in)
    w1: (d_in, d_hid)   b1: (1, d_hid) or (d_hid,)
    w2: (d_hid, d_out)  b2: (1, d_out) or (d_out,)
    """
    orig_shape = x.shape
    d_in = orig_shape[-1]
    M = int(math.prod(orig_shape[:-1]))
    d_hid = w1.shape[1]
    d_out = w2.shape[1]
    dt = x.dtype
    isz = jnp.dtype(dt).itemsize

    b1 = jnp.asarray(b1).reshape(1, d_hid)
    b2 = jnp.asarray(b2).reshape(1, d_out)
    x2d = x.reshape(M, d_in)

    budget = (int(vmem_limit_bytes) if vmem_limit_bytes is not None
              else _vmem_budget_bytes())

    # ---------------- tile-size / path selection ----------------
    weight_bytes = (d_in * d_hid + d_hid + d_hid * d_out + d_out) * isz
    # Default block_m=512 gives 256-multiples (v6e/v7x MXU is 2x256x256).
    tm_cap = min(_round_up(block_m, LANE), _round_up(M, LANE))

    def _resident_bytes(t):
        streamed = 2 * t * (d_in + d_out) * isz     # double-buffered X / out tiles
        interm = t * (d_hid + d_out) * 4            # f32 h and pre-cast y
        return weight_bytes + streamed + interm

    tm = None
    if not force_hidden_tiling:
        for t in range(tm_cap, 0, -LANE):
            if _resident_bytes(t) <= budget:
                tm = t
                break
    tiled = tm is None

    if tiled:
        # Stream W1 column-chunks / W2 row-chunks of width tk over a reduction
        # grid axis; pad the hidden dim (weights only, never X) to a multiple
        # of tk with zeros (padded hidden units contribute exactly 0).
        tk = min(_round_up(block_hidden, LANE), _round_up(d_hid, LANE))
        d_hid_p = _round_up(d_hid, tk)

        def _tiled_bytes(t):
            streamed_w = 2 * (d_in * tk + tk + tk * d_out) * isz
            streamed_x = 2 * t * (d_in + d_out) * isz
            interm = t * (tk + d_out) * 4           # h chunk + f32 accumulator
            return streamed_w + d_out * isz + streamed_x + interm

        tm = next((t for t in range(tm_cap, 0, -LANE) if _tiled_bytes(t) <= budget),
                  LANE)

        pad = d_hid_p - d_hid
        if pad:
            w1 = jnp.pad(w1, ((0, 0), (0, pad)))
            b1 = jnp.pad(b1, ((0, 0), (0, pad)))
            w2 = jnp.pad(w2, ((0, pad), (0, 0)))
    else:
        tk = d_hid
        d_hid_p = d_hid

    num_m = _cdiv(M, tm)
    # v7x megacore: give the "parallel" M axis at least 2 tiles to split.
    if num_m < 2 and M > LANE:
        tm = max(LANE, _round_up(_cdiv(M, 2), LANE))
        num_m = _cdiv(M, tm)
    num_k = d_hid_p // tk

    # Advisory cost from the true (unpadded) dims.
    flops = 2 * M * (d_in * d_hid + d_hid * d_out)
    bytes_accessed = (M * (d_in + d_out)
                      + d_in * d_hid + d_hid + d_hid * d_out + d_out) * isz
    cost = pl.CostEstimate(flops=flops, transcendentals=0,
                           bytes_accessed=bytes_accessed)

    def _call(single_buffer_consts):
        # Blocks whose index never changes only need one VMEM buffer.
        const_kw = ({"pipeline_mode": pl.Buffered(1)} if single_buffer_consts
                    else {})
        if tiled:
            kernel = _ffn_kernel_ktiled
            grid = (num_m, num_k)
            in_specs = [
                pl.BlockSpec((tm, d_in), lambda i, k: (i, 0)),    # X row tile (reused over k)
                pl.BlockSpec((d_in, tk), lambda i, k: (0, k)),    # W1 column chunk (streamed)
                pl.BlockSpec((1, tk), lambda i, k: (0, k)),       # b1 chunk
                pl.BlockSpec((tk, d_out), lambda i, k: (k, 0)),   # W2 row chunk (streamed)
                pl.BlockSpec((1, d_out), lambda i, k: (0, 0), **const_kw),  # b2 resident
            ]
            out_specs = pl.BlockSpec((tm, d_out), lambda i, k: (i, 0))
            scratch = [pltpu.VMEM((tm, d_out), jnp.float32)]
            dims = ("parallel", "arbitrary")
        else:
            kernel = _ffn_kernel_resident
            grid = (num_m,)
            in_specs = [
                pl.BlockSpec((tm, d_in), lambda i: (i, 0)),                   # X (pipelined)
                pl.BlockSpec((d_in, d_hid), lambda i: (0, 0), **const_kw),    # W1 resident
                pl.BlockSpec((1, d_hid), lambda i: (0, 0), **const_kw),       # b1 resident
                pl.BlockSpec((d_hid, d_out), lambda i: (0, 0), **const_kw),   # W2 resident
                pl.BlockSpec((1, d_out), lambda i: (0, 0), **const_kw),       # b2 resident
            ]
            out_specs = pl.BlockSpec((tm, d_out), lambda i: (i, 0))
            scratch = []
            dims = ("parallel",)

        return pl.pallas_call(
            kernel,
            out_shape=jax.ShapeDtypeStruct((M, d_out), dt),
            grid=grid,
            in_specs=in_specs,
            out_specs=out_specs,
            scratch_shapes=scratch,
            compiler_params=pltpu.CompilerParams(
                dimension_semantics=dims, vmem_limit_bytes=budget),
            cost_estimate=cost,
        )(x2d, w1, b1, w2, b2)

    try:
        out2d = _call(True)
    except Exception:
        # pipeline_mode / Buffered(1) unsupported on this jax version: fall
        # back to default double-buffered specs (correct, a bit more VMEM).
        out2d = _call(False)

    # TODO(synk): for extremely wide d_out, also tile the output columns with a
    # second "parallel" grid axis instead of keeping a full-width accumulator.
    return out2d.reshape((*orig_shape[:-1], d_out))


def init_params(key, d_in, d_hid, d_out, dtype=jnp.float32):
    """Deterministic init mimicking nn.Linear default (uniform +/- 1/sqrt(fan_in)).
    Weights are stored transposed relative to PyTorch: (in_features, out_features)."""
    k1, k2, k3, k4 = jax.random.split(key, 4)
    bound1 = 1.0 / (d_in ** 0.5)
    bound2 = 1.0 / (d_hid ** 0.5)
    w1 = jax.random.uniform(k1, (d_in, d_hid), dtype, -bound1, bound1)
    b1 = jax.random.uniform(k2, (1, d_hid), dtype, -bound1, bound1)
    w2 = jax.random.uniform(k3, (d_hid, d_out), dtype, -bound2, bound2)
    b2 = jax.random.uniform(k4, (1, d_out), dtype, -bound2, bound2)
    return w1, b1, w2, b2


if __name__ == "__main__":
    # Shapes consistent with the module's forward: X = (2, 100, 24),
    # PositionWiseFFN(24, 32, 24).
    B, S = 2, 100
    d_in, d_hid, d_out = 24, 32, 24

    key = jax.random.PRNGKey(0)
    kx, kp, kp2 = jax.random.split(key, 3)
    x = jax.random.normal(kx, (B, S, d_in), jnp.float32)

    # --- resident-weights path (weights fit comfortably in VMEM) ------------
    w1, b1, w2, b2 = init_params(kp, d_in, d_hid, d_out)
    out = position_wise_ffn(x, w1, b1, w2, b2)
    out = jax.block_until_ready(out)
    ref = jnp.maximum(x @ w1 + b1[0], 0.0) @ w2 + b2[0]
    assert out.shape == (B, S, d_out)
    assert jnp.allclose(out, ref, atol=1e-5, rtol=1e-5)

    # --- hidden-dim-tiled (K-reduction) path, incl. hidden padding ----------
    d_hid2 = 320  # not a multiple of the 128-wide hidden chunk -> exercises padding
    w1b, b1b, w2b, b2b = init_params(kp2, d_in, d_hid2, d_out)
    out2 = position_wise_ffn(x, w1b, b1b, w2b, b2b, block_m=128,
                             block_hidden=128, force_hidden_tiling=True)
    out2 = jax.block_until_ready(out2)
    ref2 = jnp.maximum(x @ w1b + b1b[0], 0.0) @ w2b + b2b[0]
    assert out2.shape == (B, S, d_out)
    assert jnp.allclose(out2, ref2, atol=1e-4, rtol=1e-4)

    print("KERNEL_OK")
</pallas_src>

<mosaic_0001>
module attributes {stable_mosaic.version = 11 : i64} {
  func.func @_ffn_kernel_resident(%arg0: i32, %arg1: memref<128x24xf32, #tpu.memory_space<vmem>>, %arg2: memref<24x32xf32, #tpu.memory_space<vmem>>, %arg3: memref<1x32xf32, #tpu.memory_space<vmem>>, %arg4: memref<32x24xf32, #tpu.memory_space<vmem>>, %arg5: memref<1x24xf32, #tpu.memory_space<vmem>>, %arg6: memref<128x24xf32, #tpu.memory_space<vmem>>) attributes {dimension_semantics = [#tpu.dimension_semantics<parallel>], iteration_bounds = array<i64: 2>, scalar_prefetch = 0 : i64, scratch_operands = 0 : i64, tpu.core_type = #tpu.core_type<tc>, window_params = [{transform_indices = @transform_0, window_bounds = array<i64: 128, 24>}, {pipeline_mode = #tpu.pipeline_mode<synchronous>, transform_indices = @transform_1, window_bounds = array<i64: 24, 32>}, {pipeline_mode = #tpu.pipeline_mode<synchronous>, transform_indices = @transform_2, window_bounds = array<i64: 1, 32>}, {pipeline_mode = #tpu.pipeline_mode<synchronous>, transform_indices = @transform_3, window_bounds = array<i64: 32, 24>}, {pipeline_mode = #tpu.pipeline_mode<synchronous>, transform_indices = @transform_4, window_bounds = array<i64: 1, 24>}, {transform_indices = @transform_5, window_bounds = array<i64: 128, 24>}]} {
    %c0 = arith.constant 0 : index
    %c0_0 = arith.constant 0 : index
    %0 = vector.load %arg1[%c0, %c0_0] : memref<128x24xf32, #tpu.memory_space<vmem>>, vector<128x24xf32>
    %c0_1 = arith.constant 0 : index
    %c0_2 = arith.constant 0 : index
    %1 = vector.load %arg2[%c0_1, %c0_2] : memref<24x32xf32, #tpu.memory_space<vmem>>, vector<24x32xf32>
    %cst = arith.constant dense<0.000000e+00> : vector<128x32xf32>
    %2 = tpu.matmul %0, %1, %cst {dimension_numbers = #tpu.dot_dimension_numbers<[1], [0], [0], [1], [0, 0, 1, 1], [], []>} : vector<128x24xf32>, vector<24x32xf32>, vector<128x32xf32> -> vector<128x32xf32>
    %c0_3 = arith.constant 0 : index
    %c0_4 = arith.constant 0 : index
    %3 = vector.load %arg3[%c0_3, %c0_4] : memref<1x32xf32, #tpu.memory_space<vmem>>, vector<1x32xf32>
    %4 = vector.broadcast %3 : vector<1x32xf32> to vector<128x32xf32>
    %5 = arith.addf %2, %4 : vector<128x32xf32>
    %cst_5 = arith.constant 0.000000e+00 : f32
    %6 = vector.broadcast %cst_5 : f32 to vector<128x32xf32>
    %7 = arith.maximumf %5, %6 : vector<128x32xf32>
    %c0_6 = arith.constant 0 : index
    %c0_7 = arith.constant 0 : index
    %8 = vector.load %arg4[%c0_6, %c0_7] : memref<32x24xf32, #tpu.memory_space<vmem>>, vector<32x24xf32>
    %cst_8 = arith.constant dense<0.000000e+00> : vector<128x24xf32>
    %9 = tpu.matmul %7, %8, %cst_8 {dimension_numbers = #tpu.dot_dimension_numbers<[1], [0], [0], [1], [0, 0, 1, 1], [], []>} : vector<128x32xf32>, vector<32x24xf32>, vector<128x24xf32> -> vector<128x24xf32>
    %c0_9 = arith.constant 0 : index
    %c0_10 = arith.constant 0 : index
    %10 = vector.load %arg5[%c0_9, %c0_10] : memref<1x24xf32, #tpu.memory_space<vmem>>, vector<1x24xf32>
    %11 = vector.broadcast %10 : vector<1x24xf32> to vector<128x24xf32>
    %12 = arith.addf %9, %11 : vector<128x24xf32>
    %c0_11 = arith.constant 0 : index
    %c0_12 = arith.constant 0 : index
    %13 = vector.load %arg6[%c0_11, %c0_12] : memref<128x24xf32, #tpu.memory_space<vmem>>, vector<128x24xf32>
    tpu.vector_store %arg6[%c0_11, %c0_12], %12 {strides = array<i32>} : memref<128x24xf32, #tpu.memory_space<vmem>>, vector<128x24xf32>,
    return
  }
  func.func @transform_0(%arg0: i32) -> (i32, i32) {
    %c0_i32 = arith.constant 0 : i32
    %c0_i32_0 = arith.constant 0 : i32
    return %arg0, %c0_i32 : i32, i32
  }
  func.func @transform_1(%arg0: i32) -> (i32, i32) {
    %c0_i32 = arith.constant 0 : i32
    %c0_i32_0 = arith.constant 0 : i32
    %c0_i32_1 = arith.constant 0 : i32
    return %c0_i32, %c0_i32_0 : i32, i32
  }
  func.func @transform_2(%arg0: i32) -> (i32, i32) {
    %c0_i32 = arith.constant 0 : i32
    %c0_i32_0 = arith.constant 0 : i32
    %c0_i32_1 = arith.constant 0 : i32
    return %c0_i32, %c0_i32_0 : i32, i32
  }
  func.func @transform_3(%arg0: i32) -> (i32, i32) {
    %c0_i32 = arith.constant 0 : i32
    %c0_i32_0 = arith.constant 0 : i32
    %c0_i32_1 = arith.constant 0 : i32
    return %c0_i32, %c0_i32_0 : i32, i32
  }
  func.func @transform_4(%arg0: i32) -> (i32, i32) {
    %c0_i32 = arith.constant 0 : i32
    %c0_i32_0 = arith.constant 0 : i32
    %c0_i32_1 = arith.constant 0 : i32
    return %c0_i32, %c0_i32_0 : i32, i32
  }
  func.func @transform_5(%arg0: i32) -> (i32, i32) {
    %c0_i32 = arith.constant 0 : i32
    %c0_i32_0 = arith.constant 0 : i32
    return %arg0, %c0_i32 : i32, i32
  }
}

module attributes {stable_mosaic.version = 11 : i64} {
  func.func @_ffn_kernel_resident(%arg0: i32, %arg1: memref<128x24xf32, #tpu.memory_space<vmem>>, %arg2: memref<24x32xf32, #tpu.memory_space<vmem>>, %arg3: memref<1x32xf32, #tpu.memory_space<vmem>>, %arg4: memref<32x24xf32, #tpu.memory_space<vmem>>, %arg5: memref<1x24xf32, #tpu.memory_space<vmem>>, %arg6: memref<128x24xf32, #tpu.memory_space<vmem>>) attributes {dimension_semantics = [#tpu.dimension_semantics<parallel>], iteration_bounds = array<i64: 2>, scalar_prefetch = 0 : i64, scratch_operands = 0 : i64, tpu.core_type = #tpu.core_type<tc>, window_params = [{transform_indices = @transform_0, window_bounds = array<i64: 128, 24>}, {pipeline_mode = #tpu.pipeline_mode<synchronous>, transform_indices = @transform_1, window_bounds = array<i64: 24, 32>}, {pipeline_mode = #tpu.pipeline_mode<synchronous>, transform_indices = @transform_2, window_bounds = array<i64: 1, 32>}, {pipeline_mode = #tpu.pipeline_mode<synchronous>, transform_indices = @transform_3, window_bounds = array<i64: 32, 24>}, {pipeline_mode = #tpu.pipeline_mode<synchronous>, transform_indices = @transform_4, window_bounds = array<i64: 1, 24>}, {transform_indices = @transform_5, window_bounds = array<i64: 128, 24>}]} {
    %c0 = arith.constant 0 : index
    %c0_0 = arith.constant 0 : index
    %0 = vector.load %arg1[%c0, %c0_0] : memref<128x24xf32, #tpu.memory_space<vmem>>, vector<128x24xf32>
    %c0_1 = arith.constant 0 : index
    %c0_2 = arith.constant 0 : index
    %1 = vector.load %arg2[%c0_1, %c0_2] : memref<24x32xf32, #tpu.memory_space<vmem>>, vector<24x32xf32>
    %cst = arith.constant dense<0.000000e+00> : vector<128x32xf32>
    %2 = tpu.matmul %0, %1, %cst {dimension_numbers = #tpu.dot_dimension_numbers<[1], [0], [0], [1], [0, 0, 1, 1], [], []>} : vector<128x24xf32>, vector<24x32xf32>, vector<128x32xf32> -> vector<128x32xf32>
    %c0_3 = arith.constant 0 : index
    %c0_4 = arith.constant 0 : index
    %3 = vector.load %arg3[%c0_3, %c0_4] : memref<1x32xf32, #tpu.memory_space<vmem>>, vector<1x32xf32>
    %4 = vector.broadcast %3 : vector<1x32xf32> to vector<128x32xf32>
    %5 = arith.addf %2, %4 : vector<128x32xf32>
    %cst_5 = arith.constant 0.000000e+00 : f32
    %6 = vector.broadcast %cst_5 : f32 to vector<128x32xf32>
    %7 = arith.maximumf %5, %6 : vector<128x32xf32>
    %c0_6 = arith.constant 0 : index
    %c0_7 = arith.constant 0 : index
    %8 = vector.load %arg4[%c0_6, %c0_7] : memref<32x24xf32, #tpu.memory_space<vmem>>, vector<32x24xf32>
    %cst_8 = arith.constant dense<0.000000e+00> : vector<128x24xf32>
    %9 = tpu.matmul %7, %8, %cst_8 {dimension_numbers = #tpu.dot_dimension_numbers<[1], [0], [0], [1], [0, 0, 1, 1], [], []>} : vector<128x32xf32>, vector<32x24xf32>, vector<128x24xf32> -> vector<128x24xf32>
    %c0_9 = arith.constant 0 : index
    %c0_10 = arith.constant 0 : index
    %10 = vector.load %arg5[%c0_9, %c0_10] : memref<1x24xf32, #tpu.memory_space<vmem>>, vector<1x24xf32>
    %11 = vector.broadcast %10 : vector<1x24xf32> to vector<128x24xf32>
    %12 = arith.addf %9, %11 : vector<128x24xf32>
    %c0_11 = arith.constant 0 : index
    %c0_12 = arith.constant 0 : index
    %13 = vector.load %arg6[%c0_11, %c0_12] : memref<128x24xf32, #tpu.memory_space<vmem>>, vector<128x24xf32>
    tpu.vector_store %arg6[%c0_11, %c0_12], %12 {strides = array<i32>} : memref<128x24xf32, #tpu.memory_space<vmem>>, vector<128x24xf32>,
    return
  }
  func.func @transform_0(%arg0: i32) -> (i32, i32) {
    %c0_i32 = arith.constant 0 : i32
    %c0_i32_0 = arith.constant 0 : i32
    return %arg0, %c0_i32 : i32, i32
  }
  func.func @transform_1(%arg0: i32) -> (i32, i32) {
    %c0_i32 = arith.constant 0 : i32
    %c0_i32_0 = arith.constant 0 : i32
    %c0_i32_1 = arith.constant 0 : i32
    return %c0_i32, %c0_i32_0 : i32, i32
  }
  func.func @transform_2(%arg0: i32) -> (i32, i32) {
    %c0_i32 = arith.constant 0 : i32
    %c0_i32_0 = arith.constant 0 : i32
    %c0_i32_1 = arith.constant 0 : i32
    return %c0_i32, %c0_i32_0 : i32, i32
  }
  func.func @transform_3(%arg0: i32) -> (i32, i32) {
    %c0_i32 = arith.constant 0 : i32
    %c0_i32_0 = arith.constant 0 : i32
    %c0_i32_1 = arith.constant 0 : i32
    return %c0_i32, %c0_i32_0 : i32, i32
  }
  func.func @transform_4(%arg0: i32) -> (i32, i32) {
    %c0_i32 = arith.constant 0 : i32
    %c0_i32_0 = arith.constant 0 : i32
    %c0_i32_1 = arith.constant 0 : i32
    return %c0_i32, %c0_i32_0 : i32, i32
  }
  func.func @transform_5(%arg0: i32) -> (i32, i32) {
    %c0_i32 = arith.constant 0 : i32
    %c0_i32_0 = arith.constant 0 : i32
    return %arg0, %c0_i32 : i32, i32
  }
}

</mosaic_0001>

<llo_original>
// kernel: tpu_custom_call.1
$region0: #{tpu_custom_call.1}
  #allocation0 [shape = 'u32[]', space=smem, size = 0x4, offset = 0x4, fixed_abs, tag = 'smem constant byte address 0x4 - core index']
  #allocation1 [shape = 'u32[144,128]{1,0:T(1,128)}', space=vmem, size = 0x12000, scoped, tag = 'internal scratch']
  %s0 = inlined_call_operand.vmem [shape: f32[200,24], index: 0, kind: input, shape index: {}]
  %s1 = inlined_call_operand.vmem [shape: f32[24,32], index: 1, kind: input, shape index: {}]
  %s2 = inlined_call_operand.vmem [shape: f32[1,32], index: 2, kind: input, shape index: {}]
  %s3 = inlined_call_operand.vmem [shape: f32[32,24], index: 3, kind: input, shape index: {}]
  %s4 = inlined_call_operand.vmem [shape: f32[1,24], index: 4, kind: input, shape index: {}]
  %s5 = inlined_call_operand.vmem [shape: f32[200,24], index: 5, kind: output, shape index: {}]
  %s6 = sld [smem:[#allocation0]]
  $region101: #{tpu_custom_call.1} parent=0
    _
  %s8 = ssub.s32 1, %s6
  %s9 = scalar_select 0, %s8, %s6
  $region1: #{tpu_custom_call.1} parent=0
    #allocation2 [shape = 'u8[131072]{0}', space=vmem, size = 0x20000, scoped, tag = 'output window, operand 0']
    loop: start=0, step=1, limit=4
    $region2: #{tpu_custom_call.1} parent=1 // loop_pre_header
      _
    $region3: #{tpu_custom_call.1} parent=1 // loop_header
      %s11 = sphi 0, %s15
      %p12 = scmp.ge.s32.totalorder %s11, 4
      %s21 = sphi 0, %s23
      %s24 = sphi 0, %s21
      %s25 = sphi 0, %s24
      %s41 = sphi 0, %s25
      %s45 = sphi 0, %s45
      %s47 = sphi 0, %s45
      %s48 = sphi 0, %s47
      %s62 = sphi 0, %s48
      %s66 = sphi 0, %s66
      %s68 = sphi 0, %s66
      %s69 = sphi 0, %s68
      %s83 = sphi 0, %s69
      %s87 = sphi 0, %s87
      %s89 = sphi 0, %s87
      %s90 = sphi 0, %s89
      %s104 = sphi 0, %s90
      %s108 = sphi 0, %s108
      %s110 = sphi 0, %s108
      %s111 = sphi 0, %s110
      %s125 = sphi 0, %s111
      %s131 = sphi 0, %s133
      %s134 = sphi 0, %s131
      %s135 = sphi 0, %s134
      %s151 = sphi 0, %s135
    $region4: #{tpu_custom_call.1} parent=1 // loop_header_branch
      %14 = sbr.rel (%p12) target = $region8
    $region5: #{tpu_custom_call.1} parent=1 // loop_body
      %s16 = ssub.s32 %s11, 1
      %s17 = ssub.s32 %s11, 2
      %s18 = sadd.s32 %s11, 1
      %s19 = ssub.s32 %s11, %s18
      %p20 = scmp.eq.s32.totalorder %s19, 0
      %s22 = sadd.s32 %s21, 1
      %s23 = scalar_select %p20, %s21, %s22
      %p26 = pneg %p20
      %p27 = scmp.eq.s32.totalorder %s11, 1
      %p28 = por %p26, %p27
      %p29 = scmp.ne.s32.totalorder %s21, %s24
      %p30 = scmp.eq.s32.totalorder %s11, 0
      %p31 = por %p29, %p30
      %p32 = scmp.ne.s32.totalorder %s21, %s24
      %p33 = scmp.eq.s32.totalorder %s16, 1
      %p34 = por %p32, %p33
      %p35 = scmp.ne.s32.totalorder %s24, %s25
      %p36 = scmp.eq.s32.totalorder %s16, 0
      %p37 = por %p35, %p36
      %p38 = scmp.ne.s32.totalorder %s24, %s25
      %p39 = scmp.eq.s32.totalorder %s17, 1
      %p40 = por %p38, %p39
      %p42 = scmp.ne.s32.totalorder %s25, %s41
      %p43 = scmp.eq.s32.totalorder %s17, 0
      %p44 = por %p42, %p43
      %s46 = sadd.s32 %s45, 1
      %p49 = scmp.eq.s32.totalorder %s11, 1
      %p50 = scmp.ne.s32.totalorder %s45, %s47
      %p51 = scmp.eq.s32.totalorder %s11, 0
      %p52 = por %p50, %p51
      %p53 = scmp.ne.s32.totalorder %s45, %s47
      %p54 = scmp.eq.s32.totalorder %s16, 1
      %p55 = por %p53, %p54
      %p56 = scmp.ne.s32.totalorder %s47, %s48
      %p57 = scmp.eq.s32.totalorder %s16, 0
      %p58 = por %p56, %p57
      %p59 = scmp.ne.s32.totalorder %s47, %s48
      %p60 = scmp.eq.s32.totalorder %s17, 1
      %p61 = por %p59, %p60
      %p63 = scmp.ne.s32.totalorder %s48, %s62
      %p64 = scmp.eq.s32.totalorder %s17, 0
      %p65 = por %p63, %p64
      %s67 = sadd.s32 %s66, 1
      %p70 = scmp.eq.s32.totalorder %s11, 1
      %p71 = scmp.ne.s32.totalorder %s66, %s68
      %p72 = scmp.eq.s32.totalorder %s11, 0
      %p73 = por %p71, %p72
      %p74 = scmp.ne.s32.totalorder %s66, %s68
      %p75 = scmp.eq.s32.totalorder %s16, 1
      %p76 = por %p74, %p75
      %p77 = scmp.ne.s32.totalorder %s68, %s69
      %p78 = scmp.eq.s32.totalorder %s16, 0
      %p79 = por %p77, %p78
      %p80 = scmp.ne.s32.totalorder %s68, %s69
      %p81 = scmp.eq.s32.totalorder %s17, 1
      %p82 = por %p80, %p81
      %p84 = scmp.ne.s32.totalorder %s69, %s83
      %p85 = scmp.eq.s32.totalorder %s17, 0
      %p86 = por %p84, %p85
      %s88 = sadd.s32 %s87, 1
      %p91 = scmp.eq.s32.totalorder %s11, 1
      %p92 = scmp.ne.s32.totalorder %s87, %s89
      %p93 = scmp.eq.s32.totalorder %s11, 0
      %p94 = por %p92, %p93
      %p95 = scmp.ne.s32.totalorder %s87, %s89
      %p96 = scmp.eq.s32.totalorder %s16, 1
      %p97 = por %p95, %p96
      %p98 = scmp.ne.s32.totalorder %s89, %s90
      %p99 = scmp.eq.s32.totalorder %s16, 0
      %p100 = por %p98, %p99
      %p101 = scmp.ne.s32.totalorder %s89, %s90
      %p102 = scmp.eq.s32.totalorder %s17, 1
      %p103 = por %p101, %p102
      %p105 = scmp.ne.s32.totalorder %s90, %s104
      %p106 = scmp.eq.s32.totalorder %s17, 0
      %p107 = por %p105, %p106
      %s109 = sadd.s32 %s108, 1
      %p112 = scmp.eq.s32.totalorder %s11, 1
      %p113 = scmp.ne.s32.totalorder %s108, %s110
      %p114 = scmp.eq.s32.totalorder %s11, 0
      %p115 = por %p113, %p114
      %p116 = scmp.ne.s32.totalorder %s108, %s110
      %p117 = scmp.eq.s32.totalorder %s16, 1
      %p118 = por %p116, %p117
      %p119 = scmp.ne.s32.totalorder %s110, %s111
      %p120 = scmp.eq.s32.totalorder %s16, 0
      %p121 = por %p119, %p120
      %p122 = scmp.ne.s32.totalorder %s110, %s111
      %p123 = scmp.eq.s32.totalorder %s17, 1
      %p124 = por %p122, %p123
      %p126 = scmp.ne.s32.totalorder %s111, %s125
      %p127 = scmp.eq.s32.totalorder %s17, 0
      %p128 = por %p126, %p127
      %s129 = ssub.s32 %s11, %s18
      %p130 = scmp.eq.s32.totalorder %s129, 0
      %s132 = sadd.s32 %s131, 1
      %s133 = scalar_select %p130, %s131, %s132
      %p136 = pneg %p130
      %p137 = scmp.eq.s32.totalorder %s11, 1
      %p138 = por %p136, %p137
      %p139 = scmp.ne.s32.totalorder %s131, %s134
      %p140 = scmp.eq.s32.totalorder %s11, 0
      %p141 = por %p139, %p140
      %p142 = scmp.ne.s32.totalorder %s131, %s134
      %p143 = scmp.eq.s32.totalorder %s16, 1
      %p144 = por %p142, %p143
      %p145 = scmp.ne.s32.totalorder %s134, %s135
      %p146 = scmp.eq.s32.totalorder %s16, 0
      %p147 = por %p145, %p146
      %p148 = scmp.ne.s32.totalorder %s134, %s135
      %p149 = scmp.eq.s32.totalorder %s17, 1
      %p150 = por %p148, %p149
      %p152 = scmp.ne.s32.totalorder %s135, %s151
      %p153 = scmp.eq.s32.totalorder %s17, 0
      %p154 = por %p152, %p153
      %p155 = scmp.le.s32.totalorder 1, %s11
      %p156 = scmp.lt.s32.totalorder %s11, 3
      %p157 = pnand %p155, %p156
      %p158 = pneg %p157
      // Predicated region
      $region9: #{tpu_custom_call.1} parent=5 // pred_check
        _
      $region10: #{tpu_custom_call.1} parent=5 // pred_check_branch
        %160 = sbr.rel (%p157) target = $region12
      $region11: #{tpu_custom_call.1} parent=5 // pred_region
        %s161 = ssub.s32 %s11, 1
        // Predicated region
        $region13: #{tpu_custom_call.1} parent=11 // pred_check
          %p162 = pneg %p58
        $region14: #{tpu_custom_call.1} parent=11 // pred_check_branch
          %164 = sbr.rel (%p162) target = $region16
        $region15: #{tpu_custom_call.1} parent=11 // pred_region
          _
        $region16: #{tpu_custom_call.1} parent=11 // pred_fallthru
          _
        // Predicated region
        $region17: #{tpu_custom_call.1} parent=11 // pred_check
          %p165 = pneg %p79
        $region18: #{tpu_custom_call.1} parent=11 // pred_check_branch
          %167 = sbr.rel (%p165) target = $region20
        $region19: #{tpu_custom_call.1} parent=11 // pred_region
          _
        $region20: #{tpu_custom_call.1} parent=11 // pred_fallthru
          _
        // Predicated region
        $region21: #{tpu_custom_call.1} parent=11 // pred_check
          %p168 = pneg %p100
        $region22: #{tpu_custom_call.1} parent=11 // pred_check_branch
          %170 = sbr.rel (%p168) target = $region24
        $region23: #{tpu_custom_call.1} parent=11 // pred_region
          _
        $region24: #{tpu_custom_call.1} parent=11 // pred_fallthru
          _
        // Predicated region
        $region25: #{tpu_custom_call.1} parent=11 // pred_check
          %p171 = pneg %p121
        $region26: #{tpu_custom_call.1} parent=11 // pred_check_branch
          %173 = sbr.rel (%p171) target = $region28
        $region27: #{tpu_custom_call.1} parent=11 // pred_region
          _
        $region28: #{tpu_custom_call.1} parent=11 // pred_fallthru
          _
      $region12: #{tpu_custom_call.1} parent=5 // pred_fallthru
        _
      %p174 = scmp.lt.s32.totalorder %s11, 2
      // Predicated region
      $region29: #{tpu_custom_call.1} parent=5 // pred_check
        %p175 = pneg %p174
      $region30: #{tpu_custom_call.1} parent=5 // pred_check_branch
        %177 = sbr.rel (%p175) target = $region32
      $region31: #{tpu_custom_call.1} parent=5 // pred_region
        // Predicated region
        $region33: #{tpu_custom_call.1} parent=31 // pred_check
          %p178 = pneg %p31
        $region34: #{tpu_custom_call.1} parent=31 // pred_check_branch
          %180 = sbr.rel (%p178) target = $region36
        $region35: #{tpu_custom_call.1} parent=31 // pred_region
          %s181 = smul.u32 16, %s11
          %s182 = ssub.s32 25, %s181
          %p183 = scmp.lt.s32.totalorder %s182, 16
          %s184 = scalar_select %p183, %s182, 16
          %s185 = smul.u32 128, %s184
          %p186 = scmp.lt.s32.totalorder %s181, 24
          %s187 = scalar_select %p186, %s181, 24
          %s188 = smul.addr %s187, 8
          %s189 = scalar_lea.vmem %s0, %s188
          %s190 = smul.u32 16, %s11
          %s191 = ssub.s32 25, %s190
          %p192 = scmp.lt.s32.totalorder %s191, 16
          %s193 = scalar_select %p192, %s191, 16
          %s194 = smul.u32 128, %s193
        $region36: #{tpu_custom_call.1} parent=31 // pred_fallthru
          _
      $region32: #{tpu_custom_call.1} parent=5 // pred_fallthru
        _
      %p195 = scmp.le.s32.totalorder 1, %s11
      %p196 = scmp.lt.s32.totalorder %s11, 3
      %p197 = pnand %p195, %p196
      %p198 = pneg %p197
      // Predicated region
      $region37: #{tpu_custom_call.1} parent=5 // pred_check
        _
      $region38: #{tpu_custom_call.1} parent=5 // pred_check_branch
        %200 = sbr.rel (%p197) target = $region40
      $region39: #{tpu_custom_call.1} parent=5 // pred_region
        %s201 = ssub.s32 %s11, 1
        %s202 = smul.u32 16, %s16
        %s203 = ssub.s32 25, %s202
        %p204 = scmp.lt.s32.totalorder %s203, 16
        %s205 = scalar_select %p204, %s203, 16
        %s206 = smul.u32 128, %s205
        %p207 = scmp.lt.s32.totalorder %s202, 24
        %s208 = scalar_select %p207, %s202, 24
        %s209 = smul.addr %s208, 8
        %s210 = scalar_lea.vmem %s0, %s209
        %p211 = pneg %p37
        %p212 = pneg %p34
        %p213 = pneg %p58
        %p214 = pneg %p55
        %p215 = pneg %p79
        %p216 = pneg %p76
        %p217 = pneg %p100
        %p218 = pneg %p97
        %p219 = pneg %p121
        %p220 = pneg %p118
        %p221 = pneg %p147
        %p222 = pneg %p144
        %s223 = sand.u32 %s134, 1
        %s224 = sand.u32 %s134, 1
        %s225 = smul.addr %s224, 128
        %s226 = scalar_lea.vmem [#allocation2], %s225
        %s227 = smul.u32 16, %s16
        %s228 = ssub.s32 25, %s227
        %p229 = scmp.lt.s32.totalorder %s228, 16
        %s230 = scalar_select %p229, %s228, 16
        %s231 = smul.u32 128, %s230
        %p232 = scmp.lt.s32.totalorder %s227, 24
        %s233 = scalar_select %p232, %s227, 24
        %s234 = smul.addr %s233, 8
        %s235 = scalar_lea.vmem %s0, %s234
        %s236 = smul.u32 16, %s16
        %s237 = ssub.s32 25, %s236
        %p238 = scmp.lt.s32.totalorder %s237, 16
        %s239 = scalar_select %p238, %s237, 16
        %s240 = smul.u32 128, %s239
        %s241 = smul.u32 16, %s16
        %s242 = ssub.s32 25, %s241
        %p243 = scmp.lt.s32.totalorder %s242, 16
        %s244 = scalar_select %p243, %s242, 16
        %s245 = smul.u32 128, %s244
        %v246 = vld [vmem:[%s235] sm:$0xff]
        %v247 = vld [vmem:[%s235 + $0x8] sm:$0xff]
        %v248 = vld [vmem:[%s235 + $0x10] sm:$0xff]
        %v249 = vld [vmem:[%s235 + $0x18] sm:$0xff]
        %v250 = vld [vmem:[%s235 + $0x20] sm:$0xff]
        %v251 = vld [vmem:[%s235 + $0x28] sm:$0xff]
        %v252 = vld [vmem:[%s235 + $0x30] sm:$0xff]
        %v253 = vld [vmem:[%s235 + $0x38] sm:$0xff]
        %v254 = vld [vmem:[%s235 + $0x40] sm:$0xff]
        %v255 = vld [vmem:[%s235 + $0x48] sm:$0xff]
        %v256 = vld [vmem:[%s235 + $0x50] sm:$0xff]
        %v257 = vld [vmem:[%s235 + $0x58] sm:$0xff]
        %v258 = vld [vmem:[%s235 + $0x60] sm:$0xff]
        %v259 = vld [vmem:[%s235 + $0x68] sm:$0xff]
        %v260 = vld [vmem:[%s235 + $0x70] sm:$0xff]
        %v261 = vld [vmem:[%s235 + $0x78] sm:$0xff]
        %v262 = vld [vmem:[%s1] sm:$0xff]
        %v263 = vld [vmem:[%s1 + $0x8] sm:$0xff]
        %v264 = vld [vmem:[%s1 + $0x10] sm:$0xff]
        %v265 = vld [vmem:[%s2] sm:$0x1]
        %v267 = vlaneseq
        %v268 = vshrl.u32 %v267, 7
        %v269 = vsub.s32 0, %v268
        %v270 = vrot.slane %v265, %v269
        %vm272 = vcmask 195584
        %v274 = vsel %vm272, %v246, 0
        %v277 = vsel %vm272, %v247, 0
        %v280 = vsel %vm272, %v248, 0
        %v283 = vsel %vm272, %v249, 0
        %v286 = vsel %vm272, %v250, 0
        %v289 = vsel %vm272, %v251, 0
        %v292 = vsel %vm272, %v252, 0
        %v295 = vsel %vm272, %v253, 0
        %v298 = vsel %vm272, %v254, 0
        %v301 = vsel %vm272, %v255, 0
        %v304 = vsel %vm272, %v256, 0
        %v307 = vsel %vm272, %v257, 0
        %v310 = vsel %vm272, %v258, 0
        %v313 = vsel %vm272, %v259, 0
        %v316 = vsel %vm272, %v260, 0
        %v319 = vsel %vm272, %v261, 0
        %321 = vmatprep.subr.mxu0 0.0
        %322 = vmatpush1.msra.mxu0 %v262
        %323 = vmatprep.subr.mxu0 0.0
        %324 = vmatpush1.msra.mxu0 %v263
        %325 = vmatprep.subr.mxu0 0.0
        %326 = vmatpush1.msra.mxu0 %v264
        %327 = vmatprep.subr.mxu0 0.0
        %328 = vmatpush1.msra.mxu0 0.0
        %329 = vmatprep.subr.mxu0 0.0
        %330 = vmatpush1.msra.mxu0 0.0
        %331 = vmatprep.subr.mxu0 0.0
        %332 = vmatpush1.msra.mxu0 0.0
        %333 = vmatprep.subr.mxu0 0.0
        %334 = vmatpush1.msra.mxu0 0.0
        %335 = vmatprep.subr.mxu0 0.0
        %336 = vmatpush1.msra.mxu0 0.0
        %337 = vmatprep.subr.mxu0 0.0
        %338 = vmatpush1.msra.mxu0 0.0
        %339 = vmatprep.subr.mxu0 0.0
        %340 = vmatpush1.msra.mxu0 0.0
        %341 = vmatprep.subr.mxu0 0.0
        %342 = vmatpush1.msra.mxu0 0.0
        %343 = vmatprep.subr.mxu0 0.0
        %344 = vmatpush1.msra.mxu0 0.0
        %345 = vmatprep.subr.mxu0 0.0
        %346 = vmatpush1.msra.mxu0 0.0
        %347 = vmatprep.subr.mxu0 0.0
        %348 = vmatpush1.msra.mxu0 0.0
        %349 = vmatprep.subr.mxu0 0.0
        %350 = vmatpush1.msra.mxu0 0.0
        %351 = vmatprep.subr.mxu0 0.0
        %352 = vmatpush1.msra.mxu0 0.0
        %353 = vmatprep.subr.mxu0 0.0
        %354 = vmatpush1.msra.mxu0 0.0
        %355 = vmatprep.subr.mxu0 0.0
        %356 = vmatpush1.msra.mxu0 0.0
        %357 = vmatprep.subr.mxu0 0.0
        %358 = vmatpush1.msra.mxu0 0.0
        %359 = vmatprep.subr.mxu0 0.0
        %360 = vmatpush1.msra.mxu0 0.0
        %361 = vmatprep.subr.mxu0 0.0
        %362 = vmatpush1.msra.mxu0 0.0
        %363 = vmatprep.subr.mxu0 0.0
        %364 = vmatpush1.msra.mxu0 0.0
        %365 = vmatprep.subr.mxu0 0.0
        %366 = vmatpush1.msra.mxu0 0.0
        %367 = vmatprep.subr.mxu0 0.0
        %368 = vmatpush1.msra.mxu0 0.0
        %369 = vmatprep.subr.mxu0 0.0
        %370 = vmatpush1.msra.mxu0 0.0
        %371 = vmatprep.subr.mxu0 0.0
        %372 = vmatpush1.msra.mxu0 0.0
        %373 = vmatprep.subr.mxu0 0.0
        %374 = vmatpush1.msra.mxu0 0.0
        %375 = vmatprep.subr.mxu0 0.0
        %376 = vmatpush1.msra.mxu0 0.0
        %377 = vmatprep.subr.mxu0 0.0
        %378 = vmatpush1.msra.mxu0 0.0
        %379 = vmatprep.subr.mxu0 0.0
        %380 = vmatpush1.msra.mxu0 0.0
        %381 = vmatprep.subr.mxu0 0.0
        %382 = vmatpush1.msra.mxu0 0.0
        %383 = vmatprep.subr.mxu0 0.0
        %384 = vmatpush1.msra.mxu0 0.0
        %385 = vmatprep.mubr.f32.mxu0 0.0
        %386 = vmatmul.mubr.f32.gmra.mrb[0].mxu0 %v274
        %v387 = vpop.f32.mrb[0].mxu0
        %v388 = vadd.f32 %v270, %v387
        %v389 = vpop.f32.mrb[0].mxu0
        %390 = vmatprep.mubr.f32.mxu0 0.0
        %391 = vmatmul.mubr.f32.gmra.mrb[0].mxu0 %v277
        %v392 = vpop.f32.mrb[0].mxu0
        %v393 = vadd.f32 %v270, %v392
        %v394 = vpop.f32.mrb[0].mxu0
        %395 = vmatprep.mubr.f32.mxu0 0.0
        %396 = vmatmul.mubr.f32.gmra.mrb[0].mxu0 %v280
        %v397 = vpop.f32.mrb[0].mxu0
        %v398 = vadd.f32 %v270, %v397
        %v399 = vpop.f32.mrb[0].mxu0
        %400 = vmatprep.mubr.f32.mxu0 0.0
        %401 = vmatmul.mubr.f32.gmra.mrb[0].mxu0 %v283
        %v402 = vpop.f32.mrb[0].mxu0
        %v403 = vadd.f32 %v270, %v402
        %v404 = vpop.f32.mrb[0].mxu0
        %405 = vmatprep.mubr.f32.mxu0 0.0
        %406 = vmatmul.mubr.f32.gmra.mrb[0].mxu0 %v286
        %v407 = vpop.f32.mrb[0].mxu0
        %v408 = vadd.f32 %v270, %v407
        %v409 = vpop.f32.mrb[0].mxu0
        %410 = vmatprep.mubr.f32.mxu0 0.0
        %411 = vmatmul.mubr.f32.gmra.mrb[0].mxu0 %v289
        %v412 = vpop.f32.mrb[0].mxu0
        %v413 = vadd.f32 %v270, %v412
        %v414 = vpop.f32.mrb[0].mxu0
        %415 = vmatprep.mubr.f32.mxu0 0.0
        %416 = vmatmul.mubr.f32.gmra.mrb[0].mxu0 %v292
        %v417 = vpop.f32.mrb[0].mxu0
        %v418 = vadd.f32 %v270, %v417
        %v419 = vpop.f32.mrb[0].mxu0
        %420 = vmatprep.mubr.f32.mxu0 0.0
        %421 = vmatmul.mubr.f32.gmra.mrb[0].mxu0 %v295
        %v422 = vpop.f32.mrb[0].mxu0
        %v423 = vadd.f32 %v270, %v422
        %v424 = vpop.f32.mrb[0].mxu0
        %425 = vmatprep.mubr.f32.mxu0 0.0
        %426 = vmatmul.mubr.f32.gmra.mrb[0].mxu0 %v298
        %v427 = vpop.f32.mrb[0].mxu0
        %v428 = vadd.f32 %v270, %v427
        %v429 = vpop.f32.mrb[0].mxu0
        %430 = vmatprep.mubr.f32.mxu0 0.0
        %431 = vmatmul.mubr.f32.gmra.mrb[0].mxu0 %v301
        %v432 = vpop.f32.mrb[0].mxu0
        %v433 = vadd.f32 %v270, %v432
        %v434 = vpop.f32.mrb[0].mxu0
        %435 = vmatprep.mubr.f32.mxu0 0.0
        %436 = vmatmul.mubr.f32.gmra.mrb[0].mxu0 %v304
        %v437 = vpop.f32.mrb[0].mxu0
        %v438 = vadd.f32 %v270, %v437
        %v439 = vpop.f32.mrb[0].mxu0
        %440 = vmatprep.mubr.f32.mxu0 0.0
        %441 = vmatmul.mubr.f32.gmra.mrb[0].mxu0 %v307
        %v442 = vpop.f32.mrb[0].mxu0
        %v443 = vadd.f32 %v270, %v442
        %v444 = vpop.f32.mrb[0].mxu0
        %445 = vmatprep.mubr.f32.mxu0 0.0
        %446 = vmatmul.mubr.f32.gmra.mrb[0].mxu0 %v310
        %v447 = vpop.f32.mrb[0].mxu0
        %v448 = vadd.f32 %v270, %v447
        %v449 = vpop.f32.mrb[0].mxu0
        %450 = vmatprep.mubr.f32.mxu0 0.0
        %451 = vmatmul.mubr.f32.gmra.mrb[0].mxu0 %v313
        %v452 = vpop.f32.mrb[0].mxu0
        %v453 = vadd.f32 %v270, %v452
        %v454 = vpop.f32.mrb[0].mxu0
        %455 = vmatprep.mubr.f32.mxu0 0.0
        %456 = vmatmul.mubr.f32.gmra.mrb[0].mxu0 %v316
        %v457 = vpop.f32.mrb[0].mxu0
        %v458 = vadd.f32 %v270, %v457
        %v459 = vpop.f32.mrb[0].mxu0
        %460 = vmatprep.mubr.f32.mxu0 0.0
        %461 = vmatmul.mubr.f32.gmra.mrb[0].mxu0 %v319
        %v462 = vpop.f32.mrb[0].mxu0
        %v463 = vadd.f32 %v270, %v462
        %v464 = vpop.f32.mrb[0].mxu0
        %465 = vdwg.mxu0
        %v466 = vmax.f32 %v388, 0.0
        %v467 = vmax.f32 %v393, 0.0
        %v468 = vmax.f32 %v398, 0.0
        %v469 = vmax.f32 %v403, 0.0
        %v470 = vmax.f32 %v408, 0.0
        %v471 = vmax.f32 %v413, 0.0
        %v472 = vmax.f32 %v418, 0.0
        %v473 = vmax.f32 %v423, 0.0
        %v474 = vmax.f32 %v428, 0.0
        %v475 = vmax.f32 %v433, 0.0
        %v476 = vmax.f32 %v438, 0.0
        %v477 = vmax.f32 %v443, 0.0
        %v478 = vmax.f32 %v448, 0.0
        %v479 = vmax.f32 %v453, 0.0
        %v480 = vmax.f32 %v458, 0.0
        %v481 = vmax.f32 %v463, 0.0
        %v482 = vld [vmem:[%s3] sm:$0xff]
        %v483 = vld [vmem:[%s3 + $0x8] sm:$0xff]
        %v484 = vld [vmem:[%s3 + $0x10] sm:$0xff]
        %v485 = vld [vmem:[%s3 + $0x18] sm:$0xff]
        %v486 = vld [vmem:[%s4] sm:$0x1]
        %v488 = vlaneseq
        %v489 = vshrl.u32 %v488, 7
        %v490 = vsub.s32 0, %v489
        %v491 = vrot.slane %v486, %v490
        %vm493 = vcmask 261120
        %v495 = vsel %vm493, %v466, 0
        %v498 = vsel %vm493, %v467, 0
        %v501 = vsel %vm493, %v468, 0
        %v504 = vsel %vm493, %v469, 0
        %v507 = vsel %vm493, %v470, 0
        %v510 = vsel %vm493, %v471, 0
        %v513 = vsel %vm493, %v472, 0
        %v516 = vsel %vm493, %v473, 0
        %v519 = vsel %vm493, %v474, 0
        %v522 = vsel %vm493, %v475, 0
        %v525 = vsel %vm493, %v476, 0
        %v528 = vsel %vm493, %v477, 0
        %v531 = vsel %vm493, %v478, 0
        %v534 = vsel %vm493, %v479, 0
        %v537 = vsel %vm493, %v480, 0
        %v540 = vsel %vm493, %v481, 0
        %542 = vmatprep.subr.mxu0 0.0
        %543 = vmatpush1.msra.mxu0 %v482
        %544 = vmatprep.subr.mxu0 0.0
        %545 = vmatpush1.msra.mxu0 %v483
        %546 = vmatprep.subr.mxu0 0.0
        %547 = vmatpush1.msra.mxu0 %v484
        %548 = vmatprep.subr.mxu0 0.0
        %549 = vmatpush1.msra.mxu0 %v485
        %550 = vmatprep.subr.mxu0 0.0
        %551 = vmatpush1.msra.mxu0 0.0
        %552 = vmatprep.subr.mxu0 0.0
        %553 = vmatpush1.msra.mxu0 0.0
        %554 = vmatprep.subr.mxu0 0.0
        %555 = vmatpush1.msra.mxu0 0.0
        %556 = vmatprep.subr.mxu0 0.0
        %557 = vmatpush1.msra.mxu0 0.0
        %558 = vmatprep.subr.mxu0 0.0
        %559 = vmatpush1.msra.mxu0 0.0
        %560 = vmatprep.subr.mxu0 0.0
        %561 = vmatpush1.msra.mxu0 0.0
        %562 = vmatprep.subr.mxu0 0.0
        %563 = vmatpush1.msra.mxu0 0.0
        %564 = vmatprep.subr.mxu0 0.0
        %565 = vmatpush1.msra.mxu0 0.0
        %566 = vmatprep.subr.mxu0 0.0
        %567 = vmatpush1.msra.mxu0 0.0
        %568 = vmatprep.subr.mxu0 0.0
        %569 = vmatpush1.msra.mxu0 0.0
        %570 = vmatprep.subr.mxu0 0.0
        %571 = vmatpush1.msra.mxu0 0.0
        %572 = vmatprep.subr.mxu0 0.0
        %573 = vmatpush1.msra.mxu0 0.0
        %574 = vmatprep.subr.mxu0 0.0
        %575 = vmatpush1.msra.mxu0 0.0
        %576 = vmatprep.subr.mxu0 0.0
        %577 = vmatpush1.msra.mxu0 0.0
        %578 = vmatprep.subr.mxu0 0.0
        %579 = vmatpush1.msra.mxu0 0.0
        %580 = vmatprep.subr.mxu0 0.0
        %581 = vmatpush1.msra.mxu0 0.0
        %582 = vmatprep.subr.mxu0 0.0
        %583 = vmatpush1.msra.mxu0 0.0
        %584 = vmatprep.subr.mxu0 0.0
        %585 = vmatpush1.msra.mxu0 0.0
        %586 = vmatprep.subr.mxu0 0.0
        %587 = vmatpush1.msra.mxu0 0.0
        %588 = vmatprep.subr.mxu0 0.0
        %589 = vmatpush1.msra.mxu0 0.0
        %590 = vmatprep.subr.mxu0 0.0
        %591 = vmatpush1.msra.mxu0 0.0
        %592 = vmatprep.subr.mxu0 0.0
        %593 = vmatpush1.msra.mxu0 0.0
        %594 = vmatprep.subr.mxu0 0.0
        %595 = vmatpush1.msra.mxu0 0.0
        %596 = vmatprep.subr.mxu0 0.0
        %597 = vmatpush1.msra.mxu0 0.0
        %598 = vmatprep.subr.mxu0 0.0
        %599 = vmatpush1.msra.mxu0 0.0
        %600 = vmatprep.subr.mxu0 0.0
        %601 = vmatpush1.msra.mxu0 0.0
        %602 = vmatprep.subr.mxu0 0.0
        %603 = vmatpush1.msra.mxu0 0.0
        %604 = vmatprep.subr.mxu0 0.0
        %605 = vmatpush1.msra.mxu0 0.0
        %606 = vmatprep.mubr.f32.mxu0 0.0
        %607 = vmatmul.mubr.f32.gmra.mrb[0].mxu0 %v495
        %v608 = vpop.f32.mrb[0].mxu0
        %v609 = vadd.f32 %v491, %v608
        %v610 = vpop.f32.mrb[0].mxu0
        %611 = vmatprep.mubr.f32.mxu0 0.0
        %612 = vmatmul.mubr.f32.gmra.mrb[0].mxu0 %v498
        %v613 = vpop.f32.mrb[0].mxu0
        %v614 = vadd.f32 %v491, %v613
        %v615 = vpop.f32.mrb[0].mxu0
        %616 = vmatprep.mubr.f32.mxu0 0.0
        %617 = vmatmul.mubr.f32.gmra.mrb[0].mxu0 %v501
        %v618 = vpop.f32.mrb[0].mxu0
        %v619 = vadd.f32 %v491, %v618
        %v620 = vpop.f32.mrb[0].mxu0
        %621 = vmatprep.mubr.f32.mxu0 0.0
        %622 = vmatmul.mubr.f32.gmra.mrb[0].mxu0 %v504
        %v623 = vpop.f32.mrb[0].mxu0
        %v624 = vadd.f32 %v491, %v623
        %v625 = vpop.f32.mrb[0].mxu0
        %626 = vmatprep.mubr.f32.mxu0 0.0
        %627 = vmatmul.mubr.f32.gmra.mrb[0].mxu0 %v507
        %v628 = vpop.f32.mrb[0].mxu0
        %v629 = vadd.f32 %v491, %v628
        %v630 = vpop.f32.mrb[0].mxu0
        %631 = vmatprep.mubr.f32.mxu0 0.0
        %632 = vmatmul.mubr.f32.gmra.mrb[0].mxu0 %v510
        %v633 = vpop.f32.mrb[0].mxu0
        %v634 = vadd.f32 %v491, %v633
        %v635 = vpop.f32.mrb[0].mxu0
        %636 = vmatprep.mubr.f32.mxu0 0.0
        %637 = vmatmul.mubr.f32.gmra.mrb[0].mxu0 %v513
        %v638 = vpop.f32.mrb[0].mxu0
        %v639 = vadd.f32 %v491, %v638
        %v640 = vpop.f32.mrb[0].mxu0
        %641 = vmatprep.mubr.f32.mxu0 0.0
        %642 = vmatmul.mubr.f32.gmra.mrb[0].mxu0 %v516
        %v643 = vpop.f32.mrb[0].mxu0
        %v644 = vadd.f32 %v491, %v643
        %v645 = vpop.f32.mrb[0].mxu0
        %646 = vmatprep.mubr.f32.mxu0 0.0
        %647 = vmatmul.mubr.f32.gmra.mrb[0].mxu0 %v519
        %v648 = vpop.f32.mrb[0].mxu0
        %v649 = vadd.f32 %v491, %v648
        %v650 = vpop.f32.mrb[0].mxu0
        %651 = vmatprep.mubr.f32.mxu0 0.0
        %652 = vmatmul.mubr.f32.gmra.mrb[0].mxu0 %v522
        %v653 = vpop.f32.mrb[0].mxu0
        %v654 = vadd.f32 %v491, %v653
        %v655 = vpop.f32.mrb[0].mxu0
        %656 = vmatprep.mubr.f32.mxu0 0.0
        %657 = vmatmul.mubr.f32.gmra.mrb[0].mxu0 %v525
        %v658 = vpop.f32.mrb[0].mxu0
        %v659 = vadd.f32 %v491, %v658
        %v660 = vpop.f32.mrb[0].mxu0
        %661 = vmatprep.mubr.f32.mxu0 0.0
        %662 = vmatmul.mubr.f32.gmra.mrb[0].mxu0 %v528
        %v663 = vpop.f32.mrb[0].mxu0
        %v664 = vadd.f32 %v491, %v663
        %v665 = vpop.f32.mrb[0].mxu0
        %666 = vmatprep.mubr.f32.mxu0 0.0
        %667 = vmatmul.mubr.f32.gmra.mrb[0].mxu0 %v531
        %v668 = vpop.f32.mrb[0].mxu0
        %v669 = vadd.f32 %v491, %v668
        %v670 = vpop.f32.mrb[0].mxu0
        %671 = vmatprep.mubr.f32.mxu0 0.0
        %672 = vmatmul.mubr.f32.gmra.mrb[0].mxu0 %v534
        %v673 = vpop.f32.mrb[0].mxu0
        %v674 = vadd.f32 %v491, %v673
        %v675 = vpop.f32.mrb[0].mxu0
        %676 = vmatprep.mubr.f32.mxu0 0.0
        %677 = vmatmul.mubr.f32.gmra.mrb[0].mxu0 %v537
        %v678 = vpop.f32.mrb[0].mxu0
        %v679 = vadd.f32 %v491, %v678
        %v680 = vpop.f32.mrb[0].mxu0
        %681 = vmatprep.mubr.f32.mxu0 0.0
        %682 = vmatmul.mubr.f32.gmra.mrb[0].mxu0 %v540
        %v683 = vpop.f32.mrb[0].mxu0
        %v684 = vadd.f32 %v491, %v683
        %v685 = vpop.f32.mrb[0].mxu0
        %686 = vdwg.mxu0
        %687 = vst.msk [vmem:[%s226] sm:$0xff] %vm272, %v609
        %688 = vst.msk [vmem:[%s226 + $0x8] sm:$0xff] %vm272, %v614
        %689 = vst.msk [vmem:[%s226 + $0x10] sm:$0xff] %vm272, %v619
        %690 = vst.msk [vmem:[%s226 + $0x18] sm:$0xff] %vm272, %v624
        %691 = vst.msk [vmem:[%s226 + $0x20] sm:$0xff] %vm272, %v629
        %692 = vst.msk [vmem:[%s226 + $0x28] sm:$0xff] %vm272, %v634
        %693 = vst.msk [vmem:[%s226 + $0x30] sm:$0xff] %vm272, %v639
        %694 = vst.msk [vmem:[%s226 + $0x38] sm:$0xff] %vm272, %v644
        %695 = vst.msk [vmem:[%s226 + $0x40] sm:$0xff] %vm272, %v649
        %696 = vst.msk [vmem:[%s226 + $0x48] sm:$0xff] %vm272, %v654
        %697 = vst.msk [vmem:[%s226 + $0x50] sm:$0xff] %vm272, %v659
        %698 = vst.msk [vmem:[%s226 + $0x58] sm:$0xff] %vm272, %v664
        %699 = vst.msk [vmem:[%s226 + $0x60] sm:$0xff] %vm272, %v669
        %700 = vst.msk [vmem:[%s226 + $0x68] sm:$0xff] %vm272, %v674
        %701 = vst.msk [vmem:[%s226 + $0x70] sm:$0xff] %vm272, %v679
        %702 = vst.msk [vmem:[%s226 + $0x78] sm:$0xff] %vm272, %v684
        %s703 = sand.u32 %s134, 1
        %s704 = sand.u32 %s134, 1
        %s705 = smul.addr %s704, 128
        %s706 = scalar_lea.vmem [#allocation2], %s705
        // Predicated region
        $region41: #{tpu_custom_call.1} parent=39 // pred_check
          %p707 = pneg %p144
        $region42: #{tpu_custom_call.1} parent=39 // pred_check_branch
          %709 = sbr.rel (%p707) target = $region44
        $region43: #{tpu_custom_call.1} parent=39 // pred_region
          %s710 = smul.u32 16, %s16
          %s711 = ssub.s32 25, %s710
          %p712 = scmp.lt.s32.totalorder %s711, 16
          %s713 = scalar_select %p712, %s711, 16
          %s714 = smul.u32 128, %s713
          %p715 = scmp.ne.s32.totalorder 0, %s714
          %s716 = smul.addr %s710, 8
          %s717 = scalar_lea.vmem %s5, %s716
          // Predicated region
          $region45: #{tpu_custom_call.1} parent=43 // pred_check
            %p718 = pneg %p715
          $region46: #{tpu_custom_call.1} parent=43 // pred_check_branch
            %720 = sbr.rel (%p718) target = $region48
          $region47: #{tpu_custom_call.1} parent=43 // pred_region
            // Predicated region
            $region49: #{tpu_custom_call.1} parent=47 // pred_check
              _
            $region50: #{tpu_custom_call.1} parent=47 // pred_check_branch
              %722 = sbr.rel (0) target = $region52
            $region51: #{tpu_custom_call.1} parent=47 // pred_region
              // Predicated region
              $region71: #{tpu_custom_call.1} parent=51 // pred_check
                _
              $region72: #{tpu_custom_call.1} parent=51 // pred_check_branch
                %801 = sbr.rel (0) target = $region74
              $region73: #{tpu_custom_call.1} parent=51 // pred_region
                %s802 = sshrl.u32 %s713, 4
                // While loop
                $region75: #{tpu_custom_call.1} parent=73 // loop_pre_header
                  _
                $region76: #{tpu_custom_call.1} parent=73 // loop_header
                  %s804 = sphi 0, %s806
                  %p805 = scmp.ge.s32.totalorder %s804, %s802
                  %s809 = sphi 0, %s846
                  %s810 = sphi %s706, %s849
                  %s811 = sphi %s717, %s850
                $region77: #{tpu_custom_call.1} parent=73 // loop_header_branch
                  %808 = sbr.rel (%p805) target = $region81
                $region78: #{tpu_custom_call.1} parent=73 // loop_body
                  %v812 = vld [vmem:[%s810] sm:$0xff]
                  %813 = vst [vmem:[%s811] sm:$0xff] %v812
                  %v814 = vld [vmem:[%s810 + $0x8] sm:$0xff]
                  %815 = vst [vmem:[%s811 + $0x8] sm:$0xff] %v814
                  %v816 = vld [vmem:[%s810 + $0x10] sm:$0xff]
                  %817 = vst [vmem:[%s811 + $0x10] sm:$0xff] %v816
                  %v818 = vld [vmem:[%s810 + $0x18] sm:$0xff]
                  %819 = vst [vmem:[%s811 + $0x18] sm:$0xff] %v818
                  %v820 = vld [vmem:[%s810 + $0x20] sm:$0xff]
                  %821 = vst [vmem:[%s811 + $0x20] sm:$0xff] %v820
                  %v822 = vld [vmem:[%s810 + $0x28] sm:$0xff]
                  %823 = vst [vmem:[%s811 + $0x28] sm:$0xff] %v822
                  %v824 = vld [vmem:[%s810 + $0x30] sm:$0xff]
                  %825 = vst [vmem:[%s811 + $0x30] sm:$0xff] %v824
                  %v826 = vld [vmem:[%s810 + $0x38] sm:$0xff]
                  %827 = vst [vmem:[%s811 + $0x38] sm:$0xff] %v826
                  %v828 = vld [vmem:[%s810 + $0x40] sm:$0xff]
                  %829 = vst [vmem:[%s811 + $0x40] sm:$0xff] %v828
                  %v830 = vld [vmem:[%s810 + $0x48] sm:$0xff]
                  %831 = vst [vmem:[%s811 + $0x48] sm:$0xff] %v830
                  %v832 = vld [vmem:[%s810 + $0x50] sm:$0xff]
                  %833 = vst [vmem:[%s811 + $0x50] sm:$0xff] %v832
                  %v834 = vld [vmem:[%s810 + $0x58] sm:$0xff]
                  %835 = vst [vmem:[%s811 + $0x58] sm:$0xff] %v834
                  %v836 = vld [vmem:[%s810 + $0x60] sm:$0xff]
                  %837 = vst [vmem:[%s811 + $0x60] sm:$0xff] %v836
                  %v838 = vld [vmem:[%s810 + $0x68] sm:$0xff]
                  %839 = vst [vmem:[%s811 + $0x68] sm:$0xff] %v838
                  %v840 = vld [vmem:[%s810 + $0x70] sm:$0xff]
                  %841 = vst [vmem:[%s811 + $0x70] sm:$0xff] %v840
                  %v842 = vld [vmem:[%s810 + $0x78] sm:$0xff]
                  %843 = vst [vmem:[%s811 + $0x78] sm:$0xff] %v842
                  %s844 = sadd.s32 1, %s809
                  %p845 = scmp.ge.s32.totalorder %s844, %s802
                  %s846 = scalar_select %p845, 0, %s844
                  %s847 = smul.u32 %s846, 128
                  %s848 = smul.u32 %s846, 128
                  %s849 = scalar_lea.vmem %s706, %s847 [#allocation2]
                  %s850 = scalar_lea.vmem %s717, %s848
                $region79: #{tpu_custom_call.1} parent=73 // loop_footer
                  %s806 = sadd.s32 %s804, 1
                $region80: #{tpu_custom_call.1} parent=73 // loop_footer_branch
                  %803 = sbr.rel target = $region76
                $region81: #{tpu_custom_call.1} parent=73 // loop_exit
                  _
                %s851 = sshrl.u32 %s713, 4
                %s852 = sand.u32 %s713, 15
                %s853 = smul.u32 %s851, 16
                %s854 = smul.u32 8, %s853
                %s855 = scalar_lea.vmem %s706, %s854 [#allocation2]
                %s856 = smul.u32 8, %s853
                %s857 = scalar_lea.vmem %s717, %s856
                // While loop
                $region82: #{tpu_custom_call.1} parent=73 // loop_pre_header
                  _
                $region83: #{tpu_custom_call.1} parent=73 // loop_header
                  %s859 = sphi 0, %s861
                  %p860 = scmp.ge.s32.totalorder %s859, %s852
                  %s864 = sphi 0, %s871
                  %s865 = sphi %s855, %s874
                  %s866 = sphi %s857, %s875
                $region84: #{tpu_custom_call.1} parent=73 // loop_header_branch
                  %863 = sbr.rel (%p860) target = $region88
                $region85: #{tpu_custom_call.1} parent=73 // loop_body
                  %v867 = vld [vmem:[%s865] sm:$0xff]
                  %868 = vst [vmem:[%s866] sm:$0xff] %v867
                  %s869 = sadd.s32 1, %s864
                  %p870 = scmp.ge.s32.totalorder %s869, %s852
                  %s871 = scalar_select %p870, 0, %s869
                  %s872 = smul.u32 %s871, 8
                  %s873 = smul.u32 %s871, 8
                  %s874 = scalar_lea.vmem %s855, %s872 [#allocation2]
                  %s875 = scalar_lea.vmem %s857, %s873
                $region86: #{tpu_custom_call.1} parent=73 // loop_footer
                  %s861 = sadd.s32 %s859, 1
                $region87: #{tpu_custom_call.1} parent=73 // loop_footer_branch
                  %858 = sbr.rel target = $region83
                $region88: #{tpu_custom_call.1} parent=73 // loop_exit
                  _
              $region74: #{tpu_custom_call.1} parent=51 // pred_fallthru
                _
              // Predicated region
              $region89: #{tpu_custom_call.1} parent=51 // pred_check
                _
              $region90: #{tpu_custom_call.1} parent=51 // pred_check_branch
                %877 = sbr.rel target = $region92
              $region91: #{tpu_custom_call.1} parent=51 // pred_region
                _
              $region92: #{tpu_custom_call.1} parent=51 // pred_fallthru
                _
            $region52: #{tpu_custom_call.1} parent=47 // pred_fallthru
              _
            // Predicated region
            $region53: #{tpu_custom_call.1} parent=47 // pred_check
              _
            $region54: #{tpu_custom_call.1} parent=47 // pred_check_branch
              %724 = sbr.rel target = $region56
            $region55: #{tpu_custom_call.1} parent=47 // pred_region
              %s726 = sshrl.u32 %s713, 4
              // While loop
              $region57: #{tpu_custom_call.1} parent=55 // loop_pre_header
                _
              $region58: #{tpu_custom_call.1} parent=55 // loop_header
                %s728 = sphi 0, %s730
                %p729 = scmp.ge.s32.totalorder %s728, %s726
                %s733 = sphi 0, %s770
                %s734 = sphi %s706, %s773
                %s735 = sphi %s717, %s774
              $region59: #{tpu_custom_call.1} parent=55 // loop_header_branch
                %732 = sbr.rel (%p729) target = $region63
              $region60: #{tpu_custom_call.1} parent=55 // loop_body
                %v736 = vld [vmem:[%s734] sm:$0xff]
                %737 = vst [vmem:[%s735] sm:$0xff] %v736
                %v738 = vld [vmem:[%s734 + $0x8] sm:$0xff]
                %739 = vst [vmem:[%s735 + $0x8] sm:$0xff] %v738
                %v740 = vld [vmem:[%s734 + $0x10] sm:$0xff]
                %741 = vst [vmem:[%s735 + $0x10] sm:$0xff] %v740
                %v742 = vld [vmem:[%s734 + $0x18] sm:$0xff]
                %743 = vst [vmem:[%s735 + $0x18] sm:$0xff] %v742
                %v744 = vld [vmem:[%s734 + $0x20] sm:$0xff]
                %745 = vst [vmem:[%s735 + $0x20] sm:$0xff] %v744
                %v746 = vld [vmem:[%s734 + $0x28] sm:$0xff]
                %747 = vst [vmem:[%s735 + $0x28] sm:$0xff] %v746
                %v748 = vld [vmem:[%s734 + $0x30] sm:$0xff]
                %749 = vst [vmem:[%s735 + $0x30] sm:$0xff] %v748
                %v750 = vld [vmem:[%s734 + $0x38] sm:$0xff]
                %751 = vst [vmem:[%s735 + $0x38] sm:$0xff] %v750
                %v752 = vld [vmem:[%s734 + $0x40] sm:$0xff]
                %753 = vst [vmem:[%s735 + $0x40] sm:$0xff] %v752
                %v754 = vld [vmem:[%s734 + $0x48] sm:$0xff]
                %755 = vst [vmem:[%s735 + $0x48] sm:$0xff] %v754
                %v756 = vld [vmem:[%s734 + $0x50] sm:$0xff]
                %757 = vst [vmem:[%s735 + $0x50] sm:$0xff] %v756
                %v758 = vld [vmem:[%s734 + $0x58] sm:$0xff]
                %759 = vst [vmem:[%s735 + $0x58] sm:$0xff] %v758
                %v760 = vld [vmem:[%s734 + $0x60] sm:$0xff]
                %761 = vst [vmem:[%s735 + $0x60] sm:$0xff] %v760
                %v762 = vld [vmem:[%s734 + $0x68] sm:$0xff]
                %763 = vst [vmem:[%s735 + $0x68] sm:$0xff] %v762
                %v764 = vld [vmem:[%s734 + $0x70] sm:$0xff]
                %765 = vst [vmem:[%s735 + $0x70] sm:$0xff] %v764
                %v766 = vld [vmem:[%s734 + $0x78] sm:$0xff]
                %767 = vst [vmem:[%s735 + $0x78] sm:$0xff] %v766
                %s768 = sadd.s32 1, %s733
                %p769 = scmp.ge.s32.totalorder %s768, %s726
                %s770 = scalar_select %p769, 0, %s768
                %s771 = smul.u32 %s770, 128
                %s772 = smul.u32 %s770, 128
                %s773 = scalar_lea.vmem %s706, %s771 [#allocation2]
                %s774 = scalar_lea.vmem %s717, %s772
              $region61: #{tpu_custom_call.1} parent=55 // loop_footer
                %s730 = sadd.s32 %s728, 1
              $region62: #{tpu_custom_call.1} parent=55 // loop_footer_branch
                %727 = sbr.rel target = $region58
              $region63: #{tpu_custom_call.1} parent=55 // loop_exit
                _
              %s775 = sshrl.u32 %s713, 4
              %s776 = sand.u32 %s713, 15
              %s777 = smul.u32 %s775, 16
              %s778 = smul.u32 8, %s777
              %s779 = scalar_lea.vmem %s706, %s778 [#allocation2]
              %s780 = smul.u32 8, %s777
              %s781 = scalar_lea.vmem %s717, %s780
              // While loop
              $region64: #{tpu_custom_call.1} parent=55 // loop_pre_header
                _
              $region65: #{tpu_custom_call.1} parent=55 // loop_header
                %s783 = sphi 0, %s785
                %p784 = scmp.ge.s32.totalorder %s783, %s776
                %s788 = sphi 0, %s795
                %s789 = sphi %s779, %s798
                %s790 = sphi %s781, %s799
              $region66: #{tpu_custom_call.1} parent=55 // loop_header_branch
                %787 = sbr.rel (%p784) target = $region70
              $region67: #{tpu_custom_call.1} parent=55 // loop_body
                %v791 = vld [vmem:[%s789] sm:$0xff]
                %792 = vst [vmem:[%s790] sm:$0xff] %v791
                %s793 = sadd.s32 1, %s788
                %p794 = scmp.ge.s32.totalorder %s793, %s776
                %s795 = scalar_select %p794, 0, %s793
                %s796 = smul.u32 %s795, 8
                %s797 = smul.u32 %s795, 8
                %s798 = scalar_lea.vmem %s779, %s796 [#allocation2]
                %s799 = scalar_lea.vmem %s781, %s797
              $region68: #{tpu_custom_call.1} parent=55 // loop_footer
                %s785 = sadd.s32 %s783, 1
              $region69: #{tpu_custom_call.1} parent=55 // loop_footer_branch
                %782 = sbr.rel target = $region65
              $region70: #{tpu_custom_call.1} parent=55 // loop_exit
                _
            $region56: #{tpu_custom_call.1} parent=47 // pred_fallthru
              _
          $region48: #{tpu_custom_call.1} parent=43 // pred_fallthru
            _
          %878 = vnop
        $region44: #{tpu_custom_call.1} parent=39 // pred_fallthru
          _
      $region40: #{tpu_custom_call.1} parent=5 // pred_fallthru
        _
      %p879 = scmp.le.s32.totalorder 2, %s11
      // Predicated region
      $region93: #{tpu_custom_call.1} parent=5 // pred_check
        %p880 = pneg %p879
      $region94: #{tpu_custom_call.1} parent=5 // pred_check_branch
        %882 = sbr.rel (%p880) target = $region96
      $region95: #{tpu_custom_call.1} parent=5 // pred_region
        %s883 = ssub.s32 %s11, 2
        // Predicated region
        $region97: #{tpu_custom_call.1} parent=95 // pred_check
          %p884 = pneg %p150
        $region98: #{tpu_custom_call.1} parent=95 // pred_check_branch
          %886 = sbr.rel (%p884) target = $region100
        $region99: #{tpu_custom_call.1} parent=95 // pred_region
          %s887 = sand.u32 %s135, 1
          %s888 = sand.u32 %s135, 1
          %s889 = smul.addr %s888, 128
          %s890 = scalar_lea.vmem [#allocation2], %s889
        $region100: #{tpu_custom_call.1} parent=95 // pred_fallthru
          _
      $region96: #{tpu_custom_call.1} parent=5 // pred_fallthru
        _
    $region6: #{tpu_custom_call.1} parent=1 // loop_footer
      %s15 = sadd.s32 1, %s11
    $region7: #{tpu_custom_call.1} parent=1 // loop_footer_branch
      %10 = sbr.rel target = $region3
    $region8: #{tpu_custom_call.1} parent=1 // loop_exit
      _

// kernel: tpu_custom_call.1
$region0: #{tpu_custom_call.1}
  #allocation0 [shape = 'u32[]', space=smem, size = 0x4, offset = 0x4, fixed_abs, tag = 'smem constant byte address 0x4 - core index']
  #allocation1 [shape = 'u32[144,128]{1,0:T(1,128)}', space=vmem, size = 0x12000, scoped, tag = 'internal scratch']
  %s0 = inlined_call_operand.vmem [shape: f32[200,24], index: 0, kind: input, shape index: {}]
  %s1 = inlined_call_operand.vmem [shape: f32[24,32], index: 1, kind: input, shape index: {}]
  %s2 = inlined_call_operand.vmem [shape: f32[1,32], index: 2, kind: input, shape index: {}]
  %s3 = inlined_call_operand.vmem [shape: f32[32,24], index: 3, kind: input, shape index: {}]
  %s4 = inlined_call_operand.vmem [shape: f32[1,24], index: 4, kind: input, shape index: {}]
  %s5 = inlined_call_operand.vmem [shape: f32[200,24], index: 5, kind: output, shape index: {}]
  %s6 = sld [smem:[#allocation0]]
  $region101: #{tpu_custom_call.1} parent=0
    _
  %s8 = ssub.s32 1, %s6
  %s9 = scalar_select 0, %s8, %s6
  $region1: #{tpu_custom_call.1} parent=0
    #allocation2 [shape = 'u8[131072]{0}', space=vmem, size = 0x20000, scoped, tag = 'output window, operand 0']
    loop: start=0, step=1, limit=4
    $region2: #{tpu_custom_call.1} parent=1 // loop_pre_header
      _
    $region3: #{tpu_custom_call.1} parent=1 // loop_header
      %s11 = sphi 0, %s15
      %p12 = scmp.ge.s32.totalorder %s11, 4
      %s21 = sphi 0, %s23
      %s24 = sphi 0, %s21
      %s25 = sphi 0, %s24
      %s41 = sphi 0, %s25
      %s45 = sphi 0, %s45
      %s47 = sphi 0, %s45
      %s48 = sphi 0, %s47
      %s62 = sphi 0, %s48
      %s66 = sphi 0, %s66
      %s68 = sphi 0, %s66
      %s69 = sphi 0, %s68
      %s83 = sphi 0, %s69
      %s87 = sphi 0, %s87
      %s89 = sphi 0, %s87
      %s90 = sphi 0, %s89
      %s104 = sphi 0, %s90
      %s108 = sphi 0, %s108
      %s110 = sphi 0, %s108
      %s111 = sphi 0, %s110
      %s125 = sphi 0, %s111
      %s131 = sphi 0, %s133
      %s134 = sphi 0, %s131
      %s135 = sphi 0, %s134
      %s151 = sphi 0, %s135
    $region4: #{tpu_custom_call.1} parent=1 // loop_header_branch
      %14 = sbr.rel (%p12) target = $region8
    $region5: #{tpu_custom_call.1} parent=1 // loop_body
      %s16 = ssub.s32 %s11, 1
      %s17 = ssub.s32 %s11, 2
      %s18 = sadd.s32 %s11, 1
      %s19 = ssub.s32 %s11, %s18
      %p20 = scmp.eq.s32.totalorder %s19, 0
      %s22 = sadd.s32 %s21, 1
      %s23 = scalar_select %p20, %s21, %s22
      %p26 = pneg %p20
      %p27 = scmp.eq.s32.totalorder %s11, 1
      %p28 = por %p26, %p27
      %p29 = scmp.ne.s32.totalorder %s21, %s24
      %p30 = scmp.eq.s32.totalorder %s11, 0
      %p31 = por %p29, %p30
      %p32 = scmp.ne.s32.totalorder %s21, %s24
      %p33 = scmp.eq.s32.totalorder %s16, 1
      %p34 = por %p32, %p33
      %p35 = scmp.ne.s32.totalorder %s24, %s25
      %p36 = scmp.eq.s32.totalorder %s16, 0
      %p37 = por %p35, %p36
      %p38 = scmp.ne.s32.totalorder %s24, %s25
      %p39 = scmp.eq.s32.totalorder %s17, 1
      %p40 = por %p38, %p39
      %p42 = scmp.ne.s32.totalorder %s25, %s41
      %p43 = scmp.eq.s32.totalorder %s17, 0
      %p44 = por %p42, %p43
      %s46 = sadd.s32 %s45, 1
      %p49 = scmp.eq.s32.totalorder %s11, 1
      %p50 = scmp.ne.s32.totalorder %s45, %s47
      %p51 = scmp.eq.s32.totalorder %s11, 0
      %p52 = por %p50, %p51
      %p53 = scmp.ne.s32.totalorder %s45, %s47
      %p54 = scmp.eq.s32.totalorder %s16, 1
      %p55 = por %p53, %p54
      %p56 = scmp.ne.s32.totalorder %s47, %s48
      %p57 = scmp.eq.s32.totalorder %s16, 0
      %p58 = por %p56, %p57
      %p59 = scmp.ne.s32.totalorder %s47, %s48
      %p60 = scmp.eq.s32.totalorder %s17, 1
      %p61 = por %p59, %p60
      %p63 = scmp.ne.s32.totalorder %s48, %s62
      %p64 = scmp.eq.s32.totalorder %s17, 0
      %p65 = por %p63, %p64
      %s67 = sadd.s32 %s66, 1
      %p70 = scmp.eq.s32.totalorder %s11, 1
      %p71 = scmp.ne.s32.totalorder %s66, %s68
      %p72 = scmp.eq.s32.totalorder %s11, 0
      %p73 = por %p71, %p72
      %p74 = scmp.ne.s32.totalorder %s66, %s68
      %p75 = scmp.eq.s32.totalorder %s16, 1
      %p76 = por %p74, %p75
      %p77 = scmp.ne.s32.totalorder %s68, %s69
      %p78 = scmp.eq.s32.totalorder %s16, 0
      %p79 = por %p77, %p78
      %p80 = scmp.ne.s32.totalorder %s68, %s69
      %p81 = scmp.eq.s32.totalorder %s17, 1
      %p82 = por %p80, %p81
      %p84 = scmp.ne.s32.totalorder %s69, %s83
      %p85 = scmp.eq.s32.totalorder %s17, 0
      %p86 = por %p84, %p85
      %s88 = sadd.s32 %s87, 1
      %p91 = scmp.eq.s32.totalorder %s11, 1
      %p92 = scmp.ne.s32.totalorder %s87, %s89
      %p93 = scmp.eq.s32.totalorder %s11, 0
      %p94 = por %p92, %p93
      %p95 = scmp.ne.s32.totalorder %s87, %s89
      %p96 = scmp.eq.s32.totalorder %s16, 1
      %p97 = por %p95, %p96
      %p98 = scmp.ne.s32.totalorder %s89, %s90
      %p99 = scmp.eq.s32.totalorder %s16, 0
      %p100 = por %p98, %p99
      %p101 = scmp.ne.s32.totalorder %s89, %s90
      %p102 = scmp.eq.s32.totalorder %s17, 1
      %p103 = por %p101, %p102
      %p105 = scmp.ne.s32.totalorder %s90, %s104
      %p106 = scmp.eq.s32.totalorder %s17, 0
      %p107 = por %p105, %p106
      %s109 = sadd.s32 %s108, 1
      %p112 = scmp.eq.s32.totalorder %s11, 1
      %p113 = scmp.ne.s32.totalorder %s108, %s110
      %p114 = scmp.eq.s32.totalorder %s11, 0
      %p115 = por %p113, %p114
      %p116 = scmp.ne.s32.totalorder %s108, %s110
      %p117 = scmp.eq.s32.totalorder %s16, 1
      %p118 = por %p116, %p117
      %p119 = scmp.ne.s32.totalorder %s110, %s111
      %p120 = scmp.eq.s32.totalorder %s16, 0
      %p121 = por %p119, %p120
      %p122 = scmp.ne.s32.totalorder %s110, %s111
      %p123 = scmp.eq.s32.totalorder %s17, 1
      %p124 = por %p122, %p123
      %p126 = scmp.ne.s32.totalorder %s111, %s125
      %p127 = scmp.eq.s32.totalorder %s17, 0
      %p128 = por %p126, %p127
      %s129 = ssub.s32 %s11, %s18
      %p130 = scmp.eq.s32.totalorder %s129, 0
      %s132 = sadd.s32 %s131, 1
      %s133 = scalar_select %p130, %s131, %s132
      %p136 = pneg %p130
      %p137 = scmp.eq.s32.totalorder %s11, 1
      %p138 = por %p136, %p137
      %p139 = scmp.ne.s32.totalorder %s131, %s134
      %p140 = scmp.eq.s32.totalorder %s11, 0
      %p141 = por %p139, %p140
      %p142 = scmp.ne.s32.totalorder %s131, %s134
      %p143 = scmp.eq.s32.totalorder %s16, 1
      %p144 = por %p142, %p143
      %p145 = scmp.ne.s32.totalorder %s134, %s135
      %p146 = scmp.eq.s32.totalorder %s16, 0
      %p147 = por %p145, %p146
      %p148 = scmp.ne.s32.totalorder %s134, %s135
      %p149 = scmp.eq.s32.totalorder %s17, 1
      %p150 = por %p148, %p149
      %p152 = scmp.ne.s32.totalorder %s135, %s151
      %p153 = scmp.eq.s32.totalorder %s17, 0
      %p154 = por %p152, %p153
      %p155 = scmp.le.s32.totalorder 1, %s11
      %p156 = scmp.lt.s32.totalorder %s11, 3
      %p157 = pnand %p155, %p156
      %p158 = pneg %p157
      // Predicated region
      $region9: #{tpu_custom_call.1} parent=5 // pred_check
        _
      $region10: #{tpu_custom_call.1} parent=5 // pred_check_branch
        %160 = sbr.rel (%p157) target = $region12
      $region11: #{tpu_custom_call.1} parent=5 // pred_region
        %s161 = ssub.s32 %s11, 1
        // Predicated region
        $region13: #{tpu_custom_call.1} parent=11 // pred_check
          %p162 = pneg %p58
        $region14: #{tpu_custom_call.1} parent=11 // pred_check_branch
          %164 = sbr.rel (%p162) target = $region16
        $region15: #{tpu_custom_call.1} parent=11 // pred_region
          _
        $region16: #{tpu_custom_call.1} parent=11 // pred_fallthru
          _
        // Predicated region
        $region17: #{tpu_custom_call.1} parent=11 // pred_check
          %p165 = pneg %p79
        $region18: #{tpu_custom_call.1} parent=11 // pred_check_branch
          %167 = sbr.rel (%p165) target = $region20
        $region19: #{tpu_custom_call.1} parent=11 // pred_region
          _
        $region20: #{tpu_custom_call.1} parent=11 // pred_fallthru
          _
        // Predicated region
        $region21: #{tpu_custom_call.1} parent=11 // pred_check
          %p168 = pneg %p100
        $region22: #{tpu_custom_call.1} parent=11 // pred_check_branch
          %170 = sbr.rel (%p168) target = $region24
        $region23: #{tpu_custom_call.1} parent=11 // pred_region
          _
        $region24: #{tpu_custom_call.1} parent=11 // pred_fallthru
          _
        // Predicated region
        $region25: #{tpu_custom_call.1} parent=11 // pred_check
          %p171 = pneg %p121
        $region26: #{tpu_custom_call.1} parent=11 // pred_check_branch
          %173 = sbr.rel (%p171) target = $region28
        $region27: #{tpu_custom_call.1} parent=11 // pred_region
          _
        $region28: #{tpu_custom_call.1} parent=11 // pred_fallthru
          _
      $region12: #{tpu_custom_call.1} parent=5 // pred_fallthru
        _
      %p174 = scmp.lt.s32.totalorder %s11, 2
      // Predicated region
      $region29: #{tpu_custom_call.1} parent=5 // pred_check
        %p175 = pneg %p174
      $region30: #{tpu_custom_call.1} parent=5 // pred_check_branch
        %177 = sbr.rel (%p175) target = $region32
      $region31: #{tpu_custom_call.1} parent=5 // pred_region
        // Predicated region
        $region33: #{tpu_custom_call.1} parent=31 // pred_check
          %p178 = pneg %p31
        $region34: #{tpu_custom_call.1} parent=31 // pred_check_branch
          %180 = sbr.rel (%p178) target = $region36
        $region35: #{tpu_custom_call.1} parent=31 // pred_region
          %s181 = smul.u32 16, %s11
          %s182 = ssub.s32 25, %s181
          %p183 = scmp.lt.s32.totalorder %s182, 16
          %s184 = scalar_select %p183, %s182, 16
          %s185 = smul.u32 128, %s184
          %p186 = scmp.lt.s32.totalorder %s181, 24
          %s187 = scalar_select %p186, %s181, 24
          %s188 = smul.addr %s187, 8
          %s189 = scalar_lea.vmem %s0, %s188
          %s190 = smul.u32 16, %s11
          %s191 = ssub.s32 25, %s190
          %p192 = scmp.lt.s32.totalorder %s191, 16
          %s193 = scalar_select %p192, %s191, 16
          %s194 = smul.u32 128, %s193
        $region36: #{tpu_custom_call.1} parent=31 // pred_fallthru
          _
      $region32: #{tpu_custom_call.1} parent=5 // pred_fallthru
        _
      %p195 = scmp.le.s32.totalorder 1, %s11
      %p196 = scmp.lt.s32.totalorder %s11, 3
      %p197 = pnand %p195, %p196
      %p198 = pneg %p197
      // Predicated region
      $region37: #{tpu_custom_call.1} parent=5 // pred_check
        _
      $region38: #{tpu_custom_call.1} parent=5 // pred_check_branch
        %200 = sbr.rel (%p197) target = $region40
      $region39: #{tpu_custom_call.1} parent=5 // pred_region
        %s201 = ssub.s32 %s11, 1
        %s202 = smul.u32 16, %s16
        %s203 = ssub.s32 25, %s202
        %p204 = scmp.lt.s32.totalorder %s203, 16
        %s205 = scalar_select %p204, %s203, 16
        %s206 = smul.u32 128, %s205
        %p207 = scmp.lt.s32.totalorder %s202, 24
        %s208 = scalar_select %p207, %s202, 24
        %s209 = smul.addr %s208, 8
        %s210 = scalar_lea.vmem %s0, %s209
        %p211 = pneg %p37
        %p212 = pneg %p34
        %p213 = pneg %p58
        %p214 = pneg %p55
        %p215 = pneg %p79
        %p216 = pneg %p76
        %p217 = pneg %p100
        %p218 = pneg %p97
        %p219 = pneg %p121
        %p220 = pneg %p118
        %p221 = pneg %p147
        %p222 = pneg %p144
        %s223 = sand.u32 %s134, 1
        %s224 = sand.u32 %s134, 1
        %s225 = smul.addr %s224, 128
        %s226 = scalar_lea.vmem [#allocation2], %s225
        %s227 = smul.u32 16, %s16
        %s228 = ssub.s32 25, %s227
        %p229 = scmp.lt.s32.totalorder %s228, 16
        %s230 = scalar_select %p229, %s228, 16
        %s231 = smul.u32 128, %s230
        %p232 = scmp.lt.s32.totalorder %s227, 24
        %s233 = scalar_select %p232, %s227, 24
        %s234 = smul.addr %s233, 8
        %s235 = scalar_lea.vmem %s0, %s234
        %s236 = smul.u32 16, %s16
        %s237 = ssub.s32 25, %s236
        %p238 = scmp.lt.s32.totalorder %s237, 16
        %s239 = scalar_select %p238, %s237, 16
        %s240 = smul.u32 128, %s239
        %s241 = smul.u32 16, %s16
        %s242 = ssub.s32 25, %s241
        %p243 = scmp.lt.s32.totalorder %s242, 16
        %s244 = scalar_select %p243, %s242, 16
        %s245 = smul.u32 128, %s244
        %v246 = vld [vmem:[%s235] sm:$0xff]
        %v247 = vld [vmem:[%s235 + $0x8] sm:$0xff]
        %v248 = vld [vmem:[%s235 + $0x10] sm:$0xff]
        %v249 = vld [vmem:[%s235 + $0x18] sm:$0xff]
        %v250 = vld [vmem:[%s235 + $0x20] sm:$0xff]
        %v251 = vld [vmem:[%s235 + $0x28] sm:$0xff]
        %v252 = vld [vmem:[%s235 + $0x30] sm:$0xff]
        %v253 = vld [vmem:[%s235 + $0x38] sm:$0xff]
        %v254 = vld [vmem:[%s235 + $0x40] sm:$0xff]
        %v255 = vld [vmem:[%s235 + $0x48] sm:$0xff]
        %v256 = vld [vmem:[%s235 + $0x50] sm:$0xff]
        %v257 = vld [vmem:[%s235 + $0x58] sm:$0xff]
        %v258 = vld [vmem:[%s235 + $0x60] sm:$0xff]
        %v259 = vld [vmem:[%s235 + $0x68] sm:$0xff]
        %v260 = vld [vmem:[%s235 + $0x70] sm:$0xff]
        %v261 = vld [vmem:[%s235 + $0x78] sm:$0xff]
        %v262 = vld [vmem:[%s1] sm:$0xff]
        %v263 = vld [vmem:[%s1 + $0x8] sm:$0xff]
        %v264 = vld [vmem:[%s1 + $0x10] sm:$0xff]
        %v265 = vld [vmem:[%s2] sm:$0x1]
        %v267 = vlaneseq
        %v268 = vshrl.u32 %v267, 7
        %v269 = vsub.s32 0, %v268
        %v270 = vrot.slane %v265, %v269
        %vm272 = vcmask 195584
        %v274 = vsel %vm272, %v246, 0
        %v277 = vsel %vm272, %v247, 0
        %v280 = vsel %vm272, %v248, 0
        %v283 = vsel %vm272, %v249, 0
        %v286 = vsel %vm272, %v250, 0
        %v289 = vsel %vm272, %v251, 0
        %v292 = vsel %vm272, %v252, 0
        %v295 = vsel %vm272, %v253, 0
        %v298 = vsel %vm272, %v254, 0
        %v301 = vsel %vm272, %v255, 0
        %v304 = vsel %vm272, %v256, 0
        %v307 = vsel %vm272, %v257, 0
        %v310 = vsel %vm272, %v258, 0
        %v313 = vsel %vm272, %v259, 0
        %v316 = vsel %vm272, %v260, 0
        %v319 = vsel %vm272, %v261, 0
        %321 = vmatprep.subr.mxu0 0.0
        %322 = vmatpush1.msra.mxu0 %v262
        %323 = vmatprep.subr.mxu0 0.0
        %324 = vmatpush1.msra.mxu0 %v263
        %325 = vmatprep.subr.mxu0 0.0
        %326 = vmatpush1.msra.mxu0 %v264
        %327 = vmatprep.subr.mxu0 0.0
        %328 = vmatpush1.msra.mxu0 0.0
        %329 = vmatprep.subr.mxu0 0.0
        %330 = vmatpush1.msra.mxu0 0.0
        %331 = vmatprep.subr.mxu0 0.0
        %332 = vmatpush1.msra.mxu0 0.0
        %333 = vmatprep.subr.mxu0 0.0
        %334 = vmatpush1.msra.mxu0 0.0
        %335 = vmatprep.subr.mxu0 0.0
        %336 = vmatpush1.msra.mxu0 0.0
        %337 = vmatprep.subr.mxu0 0.0
        %338 = vmatpush1.msra.mxu0 0.0
        %339 = vmatprep.subr.mxu0 0.0
        %340 = vmatpush1.msra.mxu0 0.0
        %341 = vmatprep.subr.mxu0 0.0
        %342 = vmatpush1.msra.mxu0 0.0
        %343 = vmatprep.subr.mxu0 0.0
        %344 = vmatpush1.msra.mxu0 0.0
        %345 = vmatprep.subr.mxu0 0.0
        %346 = vmatpush1.msra.mxu0 0.0
        %347 = vmatprep.subr.mxu0 0.0
        %348 = vmatpush1.msra.mxu0 0.0
        %349 = vmatprep.subr.mxu0 0.0
        %350 = vmatpush1.msra.mxu0 0.0
        %351 = vmatprep.subr.mxu0 0.0
        %352 = vmatpush1.msra.mxu0 0.0
        %353 = vmatprep.subr.mxu0 0.0
        %354 = vmatpush1.msra.mxu0 0.0
        %355 = vmatprep.subr.mxu0 0.0
        %356 = vmatpush1.msra.mxu0 0.0
        %357 = vmatprep.subr.mxu0 0.0
        %358 = vmatpush1.msra.mxu0 0.0
        %359 = vmatprep.subr.mxu0 0.0
        %360 = vmatpush1.msra.mxu0 0.0
        %361 = vmatprep.subr.mxu0 0.0
        %362 = vmatpush1.msra.mxu0 0.0
        %363 = vmatprep.subr.mxu0 0.0
        %364 = vmatpush1.msra.mxu0 0.0
        %365 = vmatprep.subr.mxu0 0.0
        %366 = vmatpush1.msra.mxu0 0.0
        %367 = vmatprep.subr.mxu0 0.0
        %368 = vmatpush1.msra.mxu0 0.0
        %369 = vmatprep.subr.mxu0 0.0
        %370 = vmatpush1.msra.mxu0 0.0
        %371 = vmatprep.subr.mxu0 0.0
        %372 = vmatpush1.msra.mxu0 0.0
        %373 = vmatprep.subr.mxu0 0.0
        %374 = vmatpush1.msra.mxu0 0.0
        %375 = vmatprep.subr.mxu0 0.0
        %376 = vmatpush1.msra.mxu0 0.0
        %377 = vmatprep.subr.mxu0 0.0
        %378 = vmatpush1.msra.mxu0 0.0
        %379 = vmatprep.subr.mxu0 0.0
        %380 = vmatpush1.msra.mxu0 0.0
        %381 = vmatprep.subr.mxu0 0.0
        %382 = vmatpush1.msra.mxu0 0.0
        %383 = vmatprep.subr.mxu0 0.0
        %384 = vmatpush1.msra.mxu0 0.0
        %385 = vmatprep.mubr.f32.mxu0 0.0
        %386 = vmatmul.mubr.f32.gmra.mrb[0].mxu0 %v274
        %v387 = vpop.f32.mrb[0].mxu0
        %v388 = vadd.f32 %v270, %v387
        %v389 = vpop.f32.mrb[0].mxu0
        %390 = vmatprep.mubr.f32.mxu0 0.0
        %391 = vmatmul.mubr.f32.gmra.mrb[0].mxu0 %v277
        %v392 = vpop.f32.mrb[0].mxu0
        %v393 = vadd.f32 %v270, %v392
        %v394 = vpop.f32.mrb[0].mxu0
        %395 = vmatprep.mubr.f32.mxu0 0.0
        %396 = vmatmul.mubr.f32.gmra.mrb[0].mxu0 %v280
        %v397 = vpop.f32.mrb[0].mxu0
        %v398 = vadd.f32 %v270, %v397
        %v399 = vpop.f32.mrb[0].mxu0
        %400 = vmatprep.mubr.f32.mxu0 0.0
        %401 = vmatmul.mubr.f32.gmra.mrb[0].mxu0 %v283
        %v402 = vpop.f32.mrb[0].mxu0
        %v403 = vadd.f32 %v270, %v402
        %v404 = vpop.f32.mrb[0].mxu0
        %405 = vmatprep.mubr.f32.mxu0 0.0
        %406 = vmatmul.mubr.f32.gmra.mrb[0].mxu0 %v286
        %v407 = vpop.f32.mrb[0].mxu0
        %v408 = vadd.f32 %v270, %v407
        %v409 = vpop.f32.mrb[0].mxu0
        %410 = vmatprep.mubr.f32.mxu0 0.0
        %411 = vmatmul.mubr.f32.gmra.mrb[0].mxu0 %v289
        %v412 = vpop.f32.mrb[0].mxu0
        %v413 = vadd.f32 %v270, %v412
        %v414 = vpop.f32.mrb[0].mxu0
        %415 = vmatprep.mubr.f32.mxu0 0.0
        %416 = vmatmul.mubr.f32.gmra.mrb[0].mxu0 %v292
        %v417 = vpop.f32.mrb[0].mxu0
        %v418 = vadd.f32 %v270, %v417
        %v419 = vpop.f32.mrb[0].mxu0
        %420 = vmatprep.mubr.f32.mxu0 0.0
        %421 = vmatmul.mubr.f32.gmra.mrb[0].mxu0 %v295
        %v422 = vpop.f32.mrb[0].mxu0
        %v423 = vadd.f32 %v270, %v422
        %v424 = vpop.f32.mrb[0].mxu0
        %425 = vmatprep.mubr.f32.mxu0 0.0
        %426 = vmatmul.mubr.f32.gmra.mrb[0].mxu0 %v298
        %v427 = vpop.f32.mrb[0].mxu0
        %v428 = vadd.f32 %v270, %v427
        %v429 = vpop.f32.mrb[0].mxu0
        %430 = vmatprep.mubr.f32.mxu0 0.0
        %431 = vmatmul.mubr.f32.gmra.mrb[0].mxu0 %v301
        %v432 = vpop.f32.mrb[0].mxu0
        %v433 = vadd.f32 %v270, %v432
        %v434 = vpop.f32.mrb[0].mxu0
        %435 = vmatprep.mubr.f32.mxu0 0.0
        %436 = vmatmul.mubr.f32.gmra.mrb[0].mxu0 %v304
        %v437 = vpop.f32.mrb[0].mxu0
        %v438 = vadd.f32 %v270, %v437
        %v439 = vpop.f32.mrb[0].mxu0
        %440 = vmatprep.mubr.f32.mxu0 0.0
        %441 = vmatmul.mubr.f32.gmra.mrb[0].mxu0 %v307
        %v442 = vpop.f32.mrb[0].mxu0
        %v443 = vadd.f32 %v270, %v442
        %v444 = vpop.f32.mrb[0].mxu0
        %445 = vmatprep.mubr.f32.mxu0 0.0
        %446 = vmatmul.mubr.f32.gmra.mrb[0].mxu0 %v310
        %v447 = vpop.f32.mrb[0].mxu0
        %v448 = vadd.f32 %v270, %v447
        %v449 = vpop.f32.mrb[0].mxu0
        %450 = vmatprep.mubr.f32.mxu0 0.0
        %451 = vmatmul.mubr.f32.gmra.mrb[0].mxu0 %v313
        %v452 = vpop.f32.mrb[0].mxu0
        %v453 = vadd.f32 %v270, %v452
        %v454 = vpop.f32.mrb[0].mxu0
        %455 = vmatprep.mubr.f32.mxu0 0.0
        %456 = vmatmul.mubr.f32.gmra.mrb[0].mxu0 %v316
        %v457 = vpop.f32.mrb[0].mxu0
        %v458 = vadd.f32 %v270, %v457
        %v459 = vpop.f32.mrb[0].mxu0
        %460 = vmatprep.mubr.f32.mxu0 0.0
        %461 = vmatmul.mubr.f32.gmra.mrb[0].mxu0 %v319
        %v462 = vpop.f32.mrb[0].mxu0
        %v463 = vadd.f32 %v270, %v462
        %v464 = vpop.f32.mrb[0].mxu0
        %465 = vdwg.mxu0
        %v466 = vmax.f32 %v388, 0.0
        %v467 = vmax.f32 %v393, 0.0
        %v468 = vmax.f32 %v398, 0.0
        %v469 = vmax.f32 %v403, 0.0
        %v470 = vmax.f32 %v408, 0.0
        %v471 = vmax.f32 %v413, 0.0
        %v472 = vmax.f32 %v418, 0.0
        %v473 = vmax.f32 %v423, 0.0
        %v474 = vmax.f32 %v428, 0.0
        %v475 = vmax.f32 %v433, 0.0
        %v476 = vmax.f32 %v438, 0.0
        %v477 = vmax.f32 %v443, 0.0
        %v478 = vmax.f32 %v448, 0.0
        %v479 = vmax.f32 %v453, 0.0
        %v480 = vmax.f32 %v458, 0.0
        %v481 = vmax.f32 %v463, 0.0
        %v482 = vld [vmem:[%s3] sm:$0xff]
        %v483 = vld [vmem:[%s3 + $0x8] sm:$0xff]
        %v484 = vld [vmem:[%s3 + $0x10] sm:$0xff]
        %v485 = vld [vmem:[%s3 + $0x18] sm:$0xff]
        %v486 = vld [vmem:[%s4] sm:$0x1]
        %v488 = vlaneseq
        %v489 = vshrl.u32 %v488, 7
        %v490 = vsub.s32 0, %v489
        %v491 = vrot.slane %v486, %v490
        %vm493 = vcmask 261120
        %v495 = vsel %vm493, %v466, 0
        %v498 = vsel %vm493, %v467, 0
        %v501 = vsel %vm493, %v468, 0
        %v504 = vsel %vm493, %v469, 0
        %v507 = vsel %vm493, %v470, 0
        %v510 = vsel %vm493, %v471, 0
        %v513 = vsel %vm493, %v472, 0
        %v516 = vsel %vm493, %v473, 0
        %v519 = vsel %vm493, %v474, 0
        %v522 = vsel %vm493, %v475, 0
        %v525 = vsel %vm493, %v476, 0
        %v528 = vsel %vm493, %v477, 0
        %v531 = vsel %vm493, %v478, 0
        %v534 = vsel %vm493, %v479, 0
        %v537 = vsel %vm493, %v480, 0
        %v540 = vsel %vm493, %v481, 0
        %542 = vmatprep.subr.mxu0 0.0
        %543 = vmatpush1.msra.mxu0 %v482
        %544 = vmatprep.subr.mxu0 0.0
        %545 = vmatpush1.msra.mxu0 %v483
        %546 = vmatprep.subr.mxu0 0.0
        %547 = vmatpush1.msra.mxu0 %v484
        %548 = vmatprep.subr.mxu0 0.0
        %549 = vmatpush1.msra.mxu0 %v485
        %550 = vmatprep.subr.mxu0 0.0
        %551 = vmatpush1.msra.mxu0 0.0
        %552 = vmatprep.subr.mxu0 0.0
        %553 = vmatpush1.msra.mxu0 0.0
        %554 = vmatprep.subr.mxu0 0.0
        %555 = vmatpush1.msra.mxu0 0.0
        %556 = vmatprep.subr.mxu0 0.0
        %557 = vmatpush1.msra.mxu0 0.0
        %558 = vmatprep.subr.mxu0 0.0
        %559 = vmatpush1.msra.mxu0 0.0
        %560 = vmatprep.subr.mxu0 0.0
        %561 = vmatpush1.msra.mxu0 0.0
        %562 = vmatprep.subr.mxu0 0.0
        %563 = vmatpush1.msra.mxu0 0.0
        %564 = vmatprep.subr.mxu0 0.0
        %565 = vmatpush1.msra.mxu0 0.0
        %566 = vmatprep.subr.mxu0 0.0
        %567 = vmatpush1.msra.mxu0 0.0
        %568 = vmatprep.subr.mxu0 0.0
        %569 = vmatpush1.msra.mxu0 0.0
        %570 = vmatprep.subr.mxu0 0.0
        %571 = vmatpush1.msra.mxu0 0.0
        %572 = vmatprep.subr.mxu0 0.0
        %573 = vmatpush1.msra.mxu0 0.0
        %574 = vmatprep.subr.mxu0 0.0
        %575 = vmatpush1.msra.mxu0 0.0
        %576 = vmatprep.subr.mxu0 0.0
        %577 = vmatpush1.msra.mxu0 0.0
        %578 = vmatprep.subr.mxu0 0.0
        %579 = vmatpush1.msra.mxu0 0.0
        %580 = vmatprep.subr.mxu0 0.0
        %581 = vmatpush1.msra.mxu0 0.0
        %582 = vmatprep.subr.mxu0 0.0
        %583 = vmatpush1.msra.mxu0 0.0
        %584 = vmatprep.subr.mxu0 0.0
        %585 = vmatpush1.msra.mxu0 0.0
        %586 = vmatprep.subr.mxu0 0.0
        %587 = vmatpush1.msra.mxu0 0.0
        %588 = vmatprep.subr.mxu0 0.0
        %589 = vmatpush1.msra.mxu0 0.0
        %590 = vmatprep.subr.mxu0 0.0
        %591 = vmatpush1.msra.mxu0 0.0
        %592 = vmatprep.subr.mxu0 0.0
        %593 = vmatpush1.msra.mxu0 0.0
        %594 = vmatprep.subr.mxu0 0.0
        %595 = vmatpush1.msra.mxu0 0.0
        %596 = vmatprep.subr.mxu0 0.0
        %597 = vmatpush1.msra.mxu0 0.0
        %598 = vmatprep.subr.mxu0 0.0
        %599 = vmatpush1.msra.mxu0 0.0
        %600 = vmatprep.subr.mxu0 0.0
        %601 = vmatpush1.msra.mxu0 0.0
        %602 = vmatprep.subr.mxu0 0.0
        %603 = vmatpush1.msra.mxu0 0.0
        %604 = vmatprep.subr.mxu0 0.0
        %605 = vmatpush1.msra.mxu0 0.0
        %606 = vmatprep.mubr.f32.mxu0 0.0
        %607 = vmatmul.mubr.f32.gmra.mrb[0].mxu0 %v495
        %v608 = vpop.f32.mrb[0].mxu0
        %v609 = vadd.f32 %v491, %v608
        %v610 = vpop.f32.mrb[0].mxu0
        %611 = vmatprep.mubr.f32.mxu0 0.0
        %612 = vmatmul.mubr.f32.gmra.mrb[0].mxu0 %v498
        %v613 = vpop.f32.mrb[0].mxu0
        %v614 = vadd.f32 %v491, %v613
        %v615 = vpop.f32.mrb[0].mxu0
        %616 = vmatprep.mubr.f32.mxu0 0.0
        %617 = vmatmul.mubr.f32.gmra.mrb[0].mxu0 %v501
        %v618 = vpop.f32.mrb[0].mxu0
        %v619 = vadd.f32 %v491, %v618
        %v620 = vpop.f32.mrb[0].mxu0
        %621 = vmatprep.mubr.f32.mxu0 0.0
        %622 = vmatmul.mubr.f32.gmra.mrb[0].mxu0 %v504
        %v623 = vpop.f32.mrb[0].mxu0
        %v624 = vadd.f32 %v491, %v623
        %v625 = vpop.f32.mrb[0].mxu0
        %626 = vmatprep.mubr.f32.mxu0 0.0
        %627 = vmatmul.mubr.f32.gmra.mrb[0].mxu0 %v507
        %v628 = vpop.f32.mrb[0].mxu0
        %v629 = vadd.f32 %v491, %v628
        %v630 = vpop.f32.mrb[0].mxu0
        %631 = vmatprep.mubr.f32.mxu0 0.0
        %632 = vmatmul.mubr.f32.gmra.mrb[0].mxu0 %v510
        %v633 = vpop.f32.mrb[0].mxu0
        %v634 = vadd.f32 %v491, %v633
        %v635 = vpop.f32.mrb[0].mxu0
        %636 = vmatprep.mubr.f32.mxu0 0.0
        %637 = vmatmul.mubr.f32.gmra.mrb[0].mxu0 %v513
        %v638 = vpop.f32.mrb[0].mxu0
        %v639 = vadd.f32 %v491, %v638
        %v640 = vpop.f32.mrb[0].mxu0
        %641 = vmatprep.mubr.f32.mxu0 0.0
        %642 = vmatmul.mubr.f32.gmra.mrb[0].mxu0 %v516
        %v643 = vpop.f32.mrb[0].mxu0
        %v644 = vadd.f32 %v491, %v643
        %v645 = vpop.f32.mrb[0].mxu0
        %646 = vmatprep.mubr.f32.mxu0 0.0
        %647 = vmatmul.mubr.f32.gmra.mrb[0].mxu0 %v519
        %v648 = vpop.f32.mrb[0].mxu0
        %v649 = vadd.f32 %v491, %v648
        %v650 = vpop.f32.mrb[0].mxu0
        %651 = vmatprep.mubr.f32.mxu0 0.0
        %652 = vmatmul.mubr.f32.gmra.mrb[0].mxu0 %v522
        %v653 = vpop.f32.mrb[0].mxu0
        %v654 = vadd.f32 %v491, %v653
        %v655 = vpop.f32.mrb[0].mxu0
        %656 = vmatprep.mubr.f32.mxu0 0.0
        %657 = vmatmul.mubr.f32.gmra.mrb[0].mxu0 %v525
        %v658 = vpop.f32.mrb[0].mxu0
        %v659 = vadd.f32 %v491, %v658
        %v660 = vpop.f32.mrb[0].mxu0
        %661 = vmatprep.mubr.f32.mxu0 0.0
        %662 = vmatmul.mubr.f32.gmra.mrb[0].mxu0 %v528
        %v663 = vpop.f32.mrb[0].mxu0
        %v664 = vadd.f32 %v491, %v663
        %v665 = vpop.f32.mrb[0].mxu0
        %666 = vmatprep.mubr.f32.mxu0 0.0
        %667 = vmatmul.mubr.f32.gmra.mrb[0].mxu0 %v531
        %v668 = vpop.f32.mrb[0].mxu0
        %v669 = vadd.f32 %v491, %v668
        %v670 = vpop.f32.mrb[0].mxu0
        %671 = vmatprep.mubr.f32.mxu0 0.0
        %672 = vmatmul.mubr.f32.gmra.mrb[0].mxu0 %v534
        %v673 = vpop.f32.mrb[0].mxu0
        %v674 = vadd.f32 %v491, %v673
        %v675 = vpop.f32.mrb[0].mxu0
        %676 = vmatprep.mubr.f32.mxu0 0.0
        %677 = vmatmul.mubr.f32.gmra.mrb[0].mxu0 %v537
        %v678 = vpop.f32.mrb[0].mxu0
        %v679 = vadd.f32 %v491, %v678
        %v680 = vpop.f32.mrb[0].mxu0
        %681 = vmatprep.mubr.f32.mxu0 0.0
        %682 = vmatmul.mubr.f32.gmra.mrb[0].mxu0 %v540
        %v683 = vpop.f32.mrb[0].mxu0
        %v684 = vadd.f32 %v491, %v683
        %v685 = vpop.f32.mrb[0].mxu0
        %686 = vdwg.mxu0
        %687 = vst.msk [vmem:[%s226] sm:$0xff] %vm272, %v609
        %688 = vst.msk [vmem:[%s226 + $0x8] sm:$0xff] %vm272, %v614
        %689 = vst.msk [vmem:[%s226 + $0x10] sm:$0xff] %vm272, %v619
        %690 = vst.msk [vmem:[%s226 + $0x18] sm:$0xff] %vm272, %v624
        %691 = vst.msk [vmem:[%s226 + $0x20] sm:$0xff] %vm272, %v629
        %692 = vst.msk [vmem:[%s226 + $0x28] sm:$0xff] %vm272, %v634
        %693 = vst.msk [vmem:[%s226 + $0x30] sm:$0xff] %vm272, %v639
        %694 = vst.msk [vmem:[%s226 + $0x38] sm:$0xff] %vm272, %v644
        %695 = vst.msk [vmem:[%s226 + $0x40] sm:$0xff] %vm272, %v649
        %696 = vst.msk [vmem:[%s226 + $0x48] sm:$0xff] %vm272, %v654
        %697 = vst.msk [vmem:[%s226 + $0x50] sm:$0xff] %vm272, %v659
        %698 = vst.msk [vmem:[%s226 + $0x58] sm:$0xff] %vm272, %v664
        %699 = vst.msk [vmem:[%s226 + $0x60] sm:$0xff] %vm272, %v669
        %700 = vst.msk [vmem:[%s226 + $0x68] sm:$0xff] %vm272, %v674
        %701 = vst.msk [vmem:[%s226 + $0x70] sm:$0xff] %vm272, %v679
        %702 = vst.msk [vmem:[%s226 + $0x78] sm:$0xff] %vm272, %v684
        %s703 = sand.u32 %s134, 1
        %s704 = sand.u32 %s134, 1
        %s705 = smul.addr %s704, 128
        %s706 = scalar_lea.vmem [#allocation2], %s705
        // Predicated region
        $region41: #{tpu_custom_call.1} parent=39 // pred_check
          %p707 = pneg %p144
        $region42: #{tpu_custom_call.1} parent=39 // pred_check_branch
          %709 = sbr.rel (%p707) target = $region44
        $region43: #{tpu_custom_call.1} parent=39 // pred_region
          %s710 = smul.u32 16, %s16
          %s711 = ssub.s32 25, %s710
          %p712 = scmp.lt.s32.totalorder %s711, 16
          %s713 = scalar_select %p712, %s711, 16
          %s714 = smul.u32 128, %s713
          %p715 = scmp.ne.s32.totalorder 0, %s714
          %s716 = smul.addr %s710, 8
          %s717 = scalar_lea.vmem %s5, %s716
          // Predicated region
          $region45: #{tpu_custom_call.1} parent=43 // pred_check
            %p718 = pneg %p715
          $region46: #{tpu_custom_call.1} parent=43 // pred_check_branch
            %720 = sbr.rel (%p718) target = $region48
          $region47: #{tpu_custom_call.1} parent=43 // pred_region
            // Predicated region
            $region49: #{tpu_custom_call.1} parent=47 // pred_check
              _
            $region50: #{tpu_custom_call.1} parent=47 // pred_check_branch
              %722 = sbr.rel (0) target = $region52
            $region51: #{tpu_custom_call.1} parent=47 // pred_region
              // Predicated region
              $region71: #{tpu_custom_call.1} parent=51 // pred_check
                _
              $region72: #{tpu_custom_call.1} parent=51 // pred_check_branch
                %801 = sbr.rel (0) target = $region74
              $region73: #{tpu_custom_call.1} parent=51 // pred_region
                %s802 = sshrl.u32 %s713, 4
                // While loop
                $region75: #{tpu_custom_call.1} parent=73 // loop_pre_header
                  _
                $region76: #{tpu_custom_call.1} parent=73 // loop_header
                  %s804 = sphi 0, %s806
                  %p805 = scmp.ge.s32.totalorder %s804, %s802
                  %s809 = sphi 0, %s846
                  %s810 = sphi %s706, %s849
                  %s811 = sphi %s717, %s850
                $region77: #{tpu_custom_call.1} parent=73 // loop_header_branch
                  %808 = sbr.rel (%p805) target = $region81
                $region78: #{tpu_custom_call.1} parent=73 // loop_body
                  %v812 = vld [vmem:[%s810] sm:$0xff]
                  %813 = vst [vmem:[%s811] sm:$0xff] %v812
                  %v814 = vld [vmem:[%s810 + $0x8] sm:$0xff]
                  %815 = vst [vmem:[%s811 + $0x8] sm:$0xff] %v814
                  %v816 = vld [vmem:[%s810 + $0x10] sm:$0xff]
                  %817 = vst [vmem:[%s811 + $0x10] sm:$0xff] %v816
                  %v818 = vld [vmem:[%s810 + $0x18] sm:$0xff]
                  %819 = vst [vmem:[%s811 + $0x18] sm:$0xff] %v818
                  %v820 = vld [vmem:[%s810 + $0x20] sm:$0xff]
                  %821 = vst [vmem:[%s811 + $0x20] sm:$0xff] %v820
                  %v822 = vld [vmem:[%s810 + $0x28] sm:$0xff]
                  %823 = vst [vmem:[%s811 + $0x28] sm:$0xff] %v822
                  %v824 = vld [vmem:[%s810 + $0x30] sm:$0xff]
                  %825 = vst [vmem:[%s811 + $0x30] sm:$0xff] %v824
                  %v826 = vld [vmem:[%s810 + $0x38] sm:$0xff]
                  %827 = vst [vmem:[%s811 + $0x38] sm:$0xff] %v826
                  %v828 = vld [vmem:[%s810 + $0x40] sm:$0xff]
                  %829 = vst [vmem:[%s811 + $0x40] sm:$0xff] %v828
                  %v830 = vld [vmem:[%s810 + $0x48] sm:$0xff]
                  %831 = vst [vmem:[%s811 + $0x48] sm:$0xff] %v830
                  %v832 = vld [vmem:[%s810 + $0x50] sm:$0xff]
                  %833 = vst [vmem:[%s811 + $0x50] sm:$0xff] %v832
                  %v834 = vld [vmem:[%s810 + $0x58] sm:$0xff]
                  %835 = vst [vmem:[%s811 + $0x58] sm:$0xff] %v834
                  %v836 = vld [vmem:[%s810 + $0x60] sm:$0xff]
                  %837 = vst [vmem:[%s811 + $0x60] sm:$0xff] %v836
                  %v838 = vld [vmem:[%s810 + $0x68] sm:$0xff]
                  %839 = vst [vmem:[%s811 + $0x68] sm:$0xff] %v838
                  %v840 = vld [vmem:[%s810 + $0x70] sm:$0xff]
                  %841 = vst [vmem:[%s811 + $0x70] sm:$0xff] %v840
                  %v842 = vld [vmem:[%s810 + $0x78] sm:$0xff]
                  %843 = vst [vmem:[%s811 + $0x78] sm:$0xff] %v842
                  %s844 = sadd.s32 1, %s809
                  %p845 = scmp.ge.s32.totalorder %s844, %s802
                  %s846 = scalar_select %p845, 0, %s844
                  %s847 = smul.u32 %s846, 128
                  %s848 = smul.u32 %s846, 128
                  %s849 = scalar_lea.vmem %s706, %s847 [#allocation2]
                  %s850 = scalar_lea.vmem %s717, %s848
                $region79: #{tpu_custom_call.1} parent=73 // loop_footer
                  %s806 = sadd.s32 %s804, 1
                $region80: #{tpu_custom_call.1} parent=73 // loop_footer_branch
                  %803 = sbr.rel target = $region76
                $region81: #{tpu_custom_call.1} parent=73 // loop_exit
                  _
                %s851 = sshrl.u32 %s713, 4
                %s852 = sand.u32 %s713, 15
                %s853 = smul.u32 %s851, 16
                %s854 = smul.u32 8, %s853
                %s855 = scalar_lea.vmem %s706, %s854 [#allocation2]
                %s856 = smul.u32 8, %s853
                %s857 = scalar_lea.vmem %s717, %s856
                // While loop
                $region82: #{tpu_custom_call.1} parent=73 // loop_pre_header
                  _
                $region83: #{tpu_custom_call.1} parent=73 // loop_header
                  %s859 = sphi 0, %s861
                  %p860 = scmp.ge.s32.totalorder %s859, %s852
                  %s864 = sphi 0, %s871
                  %s865 = sphi %s855, %s874
                  %s866 = sphi %s857, %s875
                $region84: #{tpu_custom_call.1} parent=73 // loop_header_branch
                  %863 = sbr.rel (%p860) target = $region88
                $region85: #{tpu_custom_call.1} parent=73 // loop_body
                  %v867 = vld [vmem:[%s865] sm:$0xff]
                  %868 = vst [vmem:[%s866] sm:$0xff] %v867
                  %s869 = sadd.s32 1, %s864
                  %p870 = scmp.ge.s32.totalorder %s869, %s852
                  %s871 = scalar_select %p870, 0, %s869
                  %s872 = smul.u32 %s871, 8
                  %s873 = smul.u32 %s871, 8
                  %s874 = scalar_lea.vmem %s855, %s872 [#allocation2]
                  %s875 = scalar_lea.vmem %s857, %s873
                $region86: #{tpu_custom_call.1} parent=73 // loop_footer
                  %s861 = sadd.s32 %s859, 1
                $region87: #{tpu_custom_call.1} parent=73 // loop_footer_branch
                  %858 = sbr.rel target = $region83
                $region88: #{tpu_custom_call.1} parent=73 // loop_exit
                  _
              $region74: #{tpu_custom_call.1} parent=51 // pred_fallthru
                _
              // Predicated region
              $region89: #{tpu_custom_call.1} parent=51 // pred_check
                _
              $region90: #{tpu_custom_call.1} parent=51 // pred_check_branch
                %877 = sbr.rel target = $region92
              $region91: #{tpu_custom_call.1} parent=51 // pred_region
                _
              $region92: #{tpu_custom_call.1} parent=51 // pred_fallthru
                _
            $region52: #{tpu_custom_call.1} parent=47 // pred_fallthru
              _
            // Predicated region
            $region53: #{tpu_custom_call.1} parent=47 // pred_check
              _
            $region54: #{tpu_custom_call.1} parent=47 // pred_check_branch
              %724 = sbr.rel target = $region56
            $region55: #{tpu_custom_call.1} parent=47 // pred_region
              %s726 = sshrl.u32 %s713, 4
              // While loop
              $region57: #{tpu_custom_call.1} parent=55 // loop_pre_header
                _
              $region58: #{tpu_custom_call.1} parent=55 // loop_header
                %s728 = sphi 0, %s730
                %p729 = scmp.ge.s32.totalorder %s728, %s726
                %s733 = sphi 0, %s770
                %s734 = sphi %s706, %s773
                %s735 = sphi %s717, %s774
              $region59: #{tpu_custom_call.1} parent=55 // loop_header_branch
                %732 = sbr.rel (%p729) target = $region63
              $region60: #{tpu_custom_call.1} parent=55 // loop_body
                %v736 = vld [vmem:[%s734] sm:$0xff]
                %737 = vst [vmem:[%s735] sm:$0xff] %v736
                %v738 = vld [vmem:[%s734 + $0x8] sm:$0xff]
                %739 = vst [vmem:[%s735 + $0x8] sm:$0xff] %v738
                %v740 = vld [vmem:[%s734 + $0x10] sm:$0xff]
                %741 = vst [vmem:[%s735 + $0x10] sm:$0xff] %v740
                %v742 = vld [vmem:[%s734 + $0x18] sm:$0xff]
                %743 = vst [vmem:[%s735 + $0x18] sm:$0xff] %v742
                %v744 = vld [vmem:[%s734 + $0x20] sm:$0xff]
                %745 = vst [vmem:[%s735 + $0x20] sm:$0xff] %v744
                %v746 = vld [vmem:[%s734 + $0x28] sm:$0xff]
                %747 = vst [vmem:[%s735 + $0x28] sm:$0xff] %v746
                %v748 = vld [vmem:[%s734 + $0x30] sm:$0xff]
                %749 = vst [vmem:[%s735 + $0x30] sm:$0xff] %v748
                %v750 = vld [vmem:[%s734 + $0x38] sm:$0xff]
                %751 = vst [vmem:[%s735 + $0x38] sm:$0xff] %v750
                %v752 = vld [vmem:[%s734 + $0x40] sm:$0xff]
                %753 = vst [vmem:[%s735 + $0x40] sm:$0xff] %v752
                %v754 = vld [vmem:[%s734 + $0x48] sm:$0xff]
                %755 = vst [vmem:[%s735 + $0x48] sm:$0xff] %v754
                %v756 = vld [vmem:[%s734 + $0x50] sm:$0xff]
                %757 = vst [vmem:[%s735 + $0x50] sm:$0xff] %v756
                %v758 = vld [vmem:[%s734 + $0x58] sm:$0xff]
                %759 = vst [vmem:[%s735 + $0x58] sm:$0xff] %v758
                %v760 = vld [vmem:[%s734 + $0x60] sm:$0xff]
                %761 = vst [vmem:[%s735 + $0x60] sm:$0xff] %v760
                %v762 = vld [vmem:[%s734 + $0x68] sm:$0xff]
                %763 = vst [vmem:[%s735 + $0x68] sm:$0xff] %v762
                %v764 = vld [vmem:[%s734 + $0x70] sm:$0xff]
                %765 = vst [vmem:[%s735 + $0x70] sm:$0xff] %v764
                %v766 = vld [vmem:[%s734 + $0x78] sm:$0xff]
                %767 = vst [vmem:[%s735 + $0x78] sm:$0xff] %v766
                %s768 = sadd.s32 1, %s733
                %p769 = scmp.ge.s32.totalorder %s768, %s726
                %s770 = scalar_select %p769, 0, %s768
                %s771 = smul.u32 %s770, 128
                %s772 = smul.u32 %s770, 128
                %s773 = scalar_lea.vmem %s706, %s771 [#allocation2]
                %s774 = scalar_lea.vmem %s717, %s772
              $region61: #{tpu_custom_call.1} parent=55 // loop_footer
                %s730 = sadd.s32 %s728, 1
              $region62: #{tpu_custom_call.1} parent=55 // loop_footer_branch
                %727 = sbr.rel target = $region58
              $region63: #{tpu_custom_call.1} parent=55 // loop_exit
                _
              %s775 = sshrl.u32 %s713, 4
              %s776 = sand.u32 %s713, 15
              %s777 = smul.u32 %s775, 16
              %s778 = smul.u32 8, %s777
              %s779 = scalar_lea.vmem %s706, %s778 [#allocation2]
              %s780 = smul.u32 8, %s777
              %s781 = scalar_lea.vmem %s717, %s780
              // While loop
              $region64: #{tpu_custom_call.1} parent=55 // loop_pre_header
                _
              $region65: #{tpu_custom_call.1} parent=55 // loop_header
                %s783 = sphi 0, %s785
                %p784 = scmp.ge.s32.totalorder %s783, %s776
                %s788 = sphi 0, %s795
                %s789 = sphi %s779, %s798
                %s790 = sphi %s781, %s799
              $region66: #{tpu_custom_call.1} parent=55 // loop_header_branch
                %787 = sbr.rel (%p784) target = $region70
              $region67: #{tpu_custom_call.1} parent=55 // loop_body
                %v791 = vld [vmem:[%s789] sm:$0xff]
                %792 = vst [vmem:[%s790] sm:$0xff] %v791
                %s793 = sadd.s32 1, %s788
                %p794 = scmp.ge.s32.totalorder %s793, %s776
                %s795 = scalar_select %p794, 0, %s793
                %s796 = smul.u32 %s795, 8
                %s797 = smul.u32 %s795, 8
                %s798 = scalar_lea.vmem %s779, %s796 [#allocation2]
                %s799 = scalar_lea.vmem %s781, %s797
              $region68: #{tpu_custom_call.1} parent=55 // loop_footer
                %s785 = sadd.s32 %s783, 1
              $region69: #{tpu_custom_call.1} parent=55 // loop_footer_branch
                %782 = sbr.rel target = $region65
              $region70: #{tpu_custom_call.1} parent=55 // loop_exit
                _
            $region56: #{tpu_custom_call.1} parent=47 // pred_fallthru
              _
          $region48: #{tpu_custom_call.1} parent=43 // pred_fallthru
            _
          %878 = vnop
        $region44: #{tpu_custom_call.1} parent=39 // pred_fallthru
          _
      $region40: #{tpu_custom_call.1} parent=5 // pred_fallthru
        _
      %p879 = scmp.le.s32.totalorder 2, %s11
      // Predicated region
      $region93: #{tpu_custom_call.1} parent=5 // pred_check
        %p880 = pneg %p879
      $region94: #{tpu_custom_call.1} parent=5 // pred_check_branch
        %882 = sbr.rel (%p880) target = $region96
      $region95: #{tpu_custom_call.1} parent=5 // pred_region
        %s883 = ssub.s32 %s11, 2
        // Predicated region
        $region97: #{tpu_custom_call.1} parent=95 // pred_check
          %p884 = pneg %p150
        $region98: #{tpu_custom_call.1} parent=95 // pred_check_branch
          %886 = sbr.rel (%p884) target = $region100
        $region99: #{tpu_custom_call.1} parent=95 // pred_region
          %s887 = sand.u32 %s135, 1
          %s888 = sand.u32 %s135, 1
          %s889 = smul.addr %s888, 128
          %s890 = scalar_lea.vmem [#allocation2], %s889
        $region100: #{tpu_custom_call.1} parent=95 // pred_fallthru
          _
      $region96: #{tpu_custom_call.1} parent=5 // pred_fallthru
        _
    $region6: #{tpu_custom_call.1} parent=1 // loop_footer
      %s15 = sadd.s32 1, %s11
    $region7: #{tpu_custom_call.1} parent=1 // loop_footer_branch
      %10 = sbr.rel target = $region3
    $region8: #{tpu_custom_call.1} parent=1 // loop_exit
      _

</llo_original>
